<compile_context>
chip_gen: v6e
topology: v6e:2x2x1
jax: 0.10.0
libtpu: 0.0.40
codegen_flags: <defaults>
</compile_context>

<pallas_src>
import jax
import jax.numpy as jnp
from jax import lax
from jax.experimental import pallas as pl
from jax.experimental.pallas import tpu as pltpu

NUM_LAYERS = 4
NUM_FILTERS = 8


# ----------------------------------------------------------------------------
# Fused Pallas kernel: 4 x (conv2x2/s2 + ReLU) + global average pool
# ----------------------------------------------------------------------------
def _encoder_fused_kernel(x_ref, w1_ref, w2_ref, w3_ref, w4_ref, b_ref, o_ref):
    """Whole encoder for TB batch elements.

    x_ref : (1, C, TB*H*W)  lanes = [tap1, tap2, tap3, tap4, t, sy, sx] order
    wX_ref: (4, F, Cin_l)   per-layer weights, tap index j = kh*2 + kw
    b_ref : (4, F, 1)       per-layer biases (f32)
    o_ref : (1, F, TB)      pooled output (f32)
    """
    TB = o_ref.shape[2]

    h = x_ref[0]                                    # (C, N0), compute dtype
    for layer, w_ref in enumerate((w1_ref, w2_ref, w3_ref, w4_ref)):
        w = w_ref[...]                              # (4, F, Cin_l)
        hc = h.astype(w.dtype)                      # narrow only for the MXU
        n_out = hc.shape[1] // 4                    # each layer shrinks lanes by 4
        # in-kernel space-to-depth: the 4 conv taps are 4 contiguous lane slices
        acc = jnp.dot(w[0], hc[:, 0:n_out], preferred_element_type=jnp.float32)
        for j in range(1, 4):
            acc = acc + jnp.dot(w[j], hc[:, j * n_out:(j + 1) * n_out],
                                preferred_element_type=jnp.float32)
        h = jnp.maximum(acc + b_ref[layer], 0.0)    # f32 bias + ReLU, (F, n_out)

    # adaptive_avg_pool2d((1,1)) + squeeze: mean over each image's S lanes (f32)
    n_final = h.shape[1]
    S = n_final // TB
    if S == 1:
        pooled = h                                  # (F, TB)
    else:
        row = lax.broadcasted_iota(jnp.int32, (n_final, TB), 0)
        col = lax.broadcasted_iota(jnp.int32, (n_final, TB), 1)
        pool = jnp.where(row // S == col, 1.0 / S, 0.0).astype(jnp.float32)
        pooled = jnp.dot(h, pool, preferred_element_type=jnp.float32)   # (F, TB)
    o_ref[0] = pooled.astype(o_ref.dtype)


# ----------------------------------------------------------------------------
# Wrapper glue
# ----------------------------------------------------------------------------
def _pick_block_batch(batch, max_tb=8):
    """Largest divisor of `batch` <= max_tb, preferring >= 2 grid steps (v7x)."""
    divs = [d for d in range(1, min(batch, max_tb) + 1) if batch % d == 0]
    two_step = [d for d in divs if batch // d >= 2]
    return max(two_step) if two_step else max(divs)


def _quadtree_lanes(obs_nchw, tb, dtype):
    """(B, C, H, W) NCHW -> (B//tb, C, tb*H*W), lane-dense minor dim.

    Lane ordering (slowest -> fastest):
      y%2, x%2, (y//2)%2, (x//2)%2, (y//4)%2, (x//4)%2, (y//8)%2, (x//8)%2,
      t (batch-in-block), y//16, x//16
    so every 2x2/stride-2 conv's 4 taps are 4 contiguous lane slices, per layer.
    """
    B, C, H, W = obs_nchw.shape
    nb = B // tb
    Sy, Sx = H // 16, W // 16
    x = obs_nchw.astype(dtype)          # reorder in the narrow dtype
    x = x.reshape(nb, tb, C, Sy, 2, 2, 2, 2, Sx, 2, 2, 2, 2)
    #  dims:      n   t   c  sy a4 a3 a2 a1 sx  b4 b3 b2 b1
    x = jnp.transpose(x, (0, 2, 7, 12, 6, 11, 5, 10, 4, 9, 1, 3, 8))
    #        -> (n, c, a1, b1, a2, b2, a3, b3, a4, b4, t, sy, sx)
    return x.reshape(nb, C, tb * H * W)


def encoder_forward(obs_nchw, params, *, compute_dtype=jnp.bfloat16,
                    max_block_batch=8):
    """Full Encoder.forward. obs_nchw: (B, C, H, W) -> (B, NUM_FILTERS) f32."""
    B, C, H, W = obs_nchw.shape
    F = NUM_FILTERS
    # TODO(synk): adaptive_avg_pool2d on arbitrary H,W; fused path needs H,W % 16 == 0.
    assert H % 16 == 0 and W % 16 == 0, "need H, W divisible by 2**num_layers"

    TB = _pick_block_batch(B, max_block_batch)
    nb = B // TB
    N0 = TB * H * W

    x = _quadtree_lanes(obs_nchw, TB, compute_dtype)        # (nb, C, N0)

    # HWIO (2,2,Cin,F) -> (4, F, Cin): tap-major, output channels on sublanes
    def prep_w(w_hwio):
        cin = w_hwio.shape[2]
        return jnp.transpose(w_hwio.reshape(4, cin, F), (0, 2, 1)).astype(compute_dtype)

    w1, w2, w3, w4 = (prep_w(p[0]) for p in params)
    b_all = jnp.stack([p[1] for p in params]).astype(jnp.float32)[:, :, None]  # (4,F,1)

    # rough VMEM budget: double-buffered (padded) input block + f32 intermediates
    itemsize = jnp.dtype(compute_dtype).itemsize
    vmem_limit = int(min(64 * 2**20,
                         max(4 * 2**20,
                             4 * C * N0 * itemsize + 8 * F * (N0 // 4) * 4)))

    full3 = lambda n: (0, 0, 0)
    out = pl.pallas_call(
        _encoder_fused_kernel,
        out_shape=jax.ShapeDtypeStruct((nb, F, TB), jnp.float32),
        grid=(nb,),
        in_specs=[
            pl.BlockSpec((1, C, N0), lambda n: (n, 0, 0)),   # activations
            pl.BlockSpec((4, F, C), full3),                  # layer-1 weight
            pl.BlockSpec((4, F, F), full3),                  # layer-2 weight
            pl.BlockSpec((4, F, F), full3),                  # layer-3 weight
            pl.BlockSpec((4, F, F), full3),                  # layer-4 weight
            pl.BlockSpec((4, F, 1), full3),                  # stacked biases
        ],
        out_specs=pl.BlockSpec((1, F, TB), lambda n: (n, 0, 0)),
        compiler_params=pltpu.CompilerParams(
            dimension_semantics=("parallel",),               # megacore on v7x
            vmem_limit_bytes=vmem_limit),
    )(x, w1, w2, w3, w4, b_all)

    # (nb, F, TB) -> (B, F): tiny XLA transpose; keeps the kernel store contiguous
    return jnp.transpose(out, (0, 2, 1)).reshape(B, F)


# ----------------------------------------------------------------------------
# Parameter initialization (deterministic, PyTorch Conv2d default-style bounds)
# ----------------------------------------------------------------------------
def init_encoder_params(key, obs_channels):
    params = []
    cin = obs_channels
    for _ in range(NUM_LAYERS):
        key, kw, kb = jax.random.split(key, 3)
        fan_in = cin * 2 * 2
        bound = 1.0 / jnp.sqrt(fan_in)
        # PyTorch layout (F, C, 2, 2) -> HWIO (kh, kw, C, F)
        w_pt = jax.random.uniform(kw, (NUM_FILTERS, cin, 2, 2),
                                  minval=-bound, maxval=bound, dtype=jnp.float32)
        b = jax.random.uniform(kb, (NUM_FILTERS,),
                               minval=-bound, maxval=bound, dtype=jnp.float32)
        w_hwio = jnp.transpose(w_pt, (2, 3, 1, 0))
        params.append((w_hwio, b))
        cin = NUM_FILTERS
    return params


# ----------------------------------------------------------------------------
# Pure-JAX reference for a sanity check
# ----------------------------------------------------------------------------
def encoder_reference(obs_nchw, params):
    x = jnp.transpose(obs_nchw, (0, 2, 3, 1)).astype(jnp.float32)
    for (w, b) in params:
        x = lax.conv_general_dilated(
            x, w, window_strides=(2, 2), padding="VALID",
            dimension_numbers=("NHWC", "HWIO", "NHWC"))
        x = jnp.maximum(x + b, 0.0)
    return jnp.mean(x, axis=(1, 2))


if __name__ == "__main__":
    key = jax.random.PRNGKey(0)
    k_obs, k_params = jax.random.split(key)

    B, C, H, W = 2, 4, 16, 16  # H, W divisible by 2**4 for the 4 stride-2 convs
    obs = jax.random.normal(k_obs, (B, C, H, W), dtype=jnp.float32)
    params = init_encoder_params(k_params, C)

    ref = jax.block_until_ready(encoder_reference(obs, params))

    # f32 data path: exact parity with the reference.
    fwd_f32 = jax.jit(lambda o, p: encoder_forward(o, p, compute_dtype=jnp.float32))
    out_f32 = jax.block_until_ready(fwd_f32(obs, params))
    assert out_f32.shape == (B, NUM_FILTERS), out_f32.shape
    assert jnp.allclose(out_f32, ref, atol=1e-5, rtol=1e-5), (out_f32, ref)

    # default bf16-fed MXU path (f32 accumulate / bias / ReLU / pool).
    out_bf16 = jax.block_until_ready(jax.jit(encoder_forward)(obs, params))
    assert out_bf16.shape == (B, NUM_FILTERS), out_bf16.shape
    assert jnp.allclose(out_bf16, ref, atol=1e-2, rtol=5e-2), (out_bf16, ref)

    print("KERNEL_OK")
</pallas_src>

<mosaic_0001>
module attributes {stable_mosaic.version = 11 : i64} {
  func.func @_encoder_fused_kernel(%arg0: i32, %arg1: memref<1x4x256xf32, #tpu.memory_space<vmem>>, %arg2: memref<4x8x4xf32, #tpu.memory_space<vmem>>, %arg3: memref<4x8x8xf32, #tpu.memory_space<vmem>>, %arg4: memref<4x8x8xf32, #tpu.memory_space<vmem>>, %arg5: memref<4x8x8xf32, #tpu.memory_space<vmem>>, %arg6: memref<4x8x1xf32, #tpu.memory_space<vmem>>, %arg7: memref<1x8x1xf32, #tpu.memory_space<vmem>>) attributes {dimension_semantics = [#tpu.dimension_semantics<parallel>], iteration_bounds = array<i64: 2>, scalar_prefetch = 0 : i64, scratch_operands = 0 : i64, tpu.core_type = #tpu.core_type<tc>, window_params = [{transform_indices = @transform_0, window_bounds = array<i64: 1, 4, 256>}, {pipeline_mode = #tpu.pipeline_mode<synchronous>, transform_indices = @transform_1, window_bounds = array<i64: 4, 8, 4>}, {pipeline_mode = #tpu.pipeline_mode<synchronous>, transform_indices = @transform_2, window_bounds = array<i64: 4, 8, 8>}, {pipeline_mode = #tpu.pipeline_mode<synchronous>, transform_indices = @transform_3, window_bounds = array<i64: 4, 8, 8>}, {pipeline_mode = #tpu.pipeline_mode<synchronous>, transform_indices = @transform_4, window_bounds = array<i64: 4, 8, 8>}, {pipeline_mode = #tpu.pipeline_mode<synchronous>, transform_indices = @transform_5, window_bounds = array<i64: 4, 8, 1>}, {transform_indices = @transform_6, window_bounds = array<i64: 1, 8, 1>}]} {
    %c0 = arith.constant 0 : index
    %c0_0 = arith.constant 0 : index
    %c0_1 = arith.constant 0 : index
    %0 = vector.load %arg1[%c0, %c0_0, %c0_1] : memref<1x4x256xf32, #tpu.memory_space<vmem>>, vector<1x4x256xf32>
    %1 = vector.shape_cast %0 : vector<1x4x256xf32> to vector<4x256xf32>
    %c0_2 = arith.constant 0 : index
    %c0_3 = arith.constant 0 : index
    %c0_4 = arith.constant 0 : index
    %2 = vector.load %arg2[%c0_2, %c0_3, %c0_4] : memref<4x8x4xf32, #tpu.memory_space<vmem>>, vector<4x8x4xf32>
    %3 = vector.extract_strided_slice %2 {offsets = [0, 0, 0], sizes = [1, 8, 4], strides = [1, 1, 1]} : vector<4x8x4xf32> to vector<1x8x4xf32>
    %4 = vector.shape_cast %3 : vector<1x8x4xf32> to vector<8x4xf32>
    %5 = vector.extract_strided_slice %1 {offsets = [0, 0], sizes = [4, 64], strides = [1, 1]} : vector<4x256xf32> to vector<4x64xf32>
    %cst = arith.constant dense<0.000000e+00> : vector<8x64xf32>
    %6 = tpu.matmul %4, %5, %cst {dimension_numbers = #tpu.dot_dimension_numbers<[1], [0], [0], [1], [0, 0, 1, 1], [], []>} : vector<8x4xf32>, vector<4x64xf32>, vector<8x64xf32> -> vector<8x64xf32>
    %7 = vector.extract_strided_slice %2 {offsets = [1, 0, 0], sizes = [1, 8, 4], strides = [1, 1, 1]} : vector<4x8x4xf32> to vector<1x8x4xf32>
    %8 = vector.shape_cast %7 : vector<1x8x4xf32> to vector<8x4xf32>
    %9 = vector.extract_strided_slice %1 {offsets = [0, 64], sizes = [4, 64], strides = [1, 1]} : vector<4x256xf32> to vector<4x64xf32>
    %cst_5 = arith.constant dense<0.000000e+00> : vector<8x64xf32>
    %10 = tpu.matmul %8, %9, %cst_5 {dimension_numbers = #tpu.dot_dimension_numbers<[1], [0], [0], [1], [0, 0, 1, 1], [], []>} : vector<8x4xf32>, vector<4x64xf32>, vector<8x64xf32> -> vector<8x64xf32>
    %11 = arith.addf %6, %10 : vector<8x64xf32>
    %12 = vector.extract_strided_slice %2 {offsets = [2, 0, 0], sizes = [1, 8, 4], strides = [1, 1, 1]} : vector<4x8x4xf32> to vector<1x8x4xf32>
    %13 = vector.shape_cast %12 : vector<1x8x4xf32> to vector<8x4xf32>
    %14 = vector.extract_strided_slice %1 {offsets = [0, 128], sizes = [4, 64], strides = [1, 1]} : vector<4x256xf32> to vector<4x64xf32>
    %cst_6 = arith.constant dense<0.000000e+00> : vector<8x64xf32>
    %15 = tpu.matmul %13, %14, %cst_6 {dimension_numbers = #tpu.dot_dimension_numbers<[1], [0], [0], [1], [0, 0, 1, 1], [], []>} : vector<8x4xf32>, vector<4x64xf32>, vector<8x64xf32> -> vector<8x64xf32>
    %16 = arith.addf %11, %15 : vector<8x64xf32>
    %17 = vector.extract_strided_slice %2 {offsets = [3, 0, 0], sizes = [1, 8, 4], strides = [1, 1, 1]} : vector<4x8x4xf32> to vector<1x8x4xf32>
    %18 = vector.shape_cast %17 : vector<1x8x4xf32> to vector<8x4xf32>
    %19 = vector.extract_strided_slice %1 {offsets = [0, 192], sizes = [4, 64], strides = [1, 1]} : vector<4x256xf32> to vector<4x64xf32>
    %cst_7 = arith.constant dense<0.000000e+00> : vector<8x64xf32>
    %20 = tpu.matmul %18, %19, %cst_7 {dimension_numbers = #tpu.dot_dimension_numbers<[1], [0], [0], [1], [0, 0, 1, 1], [], []>} : vector<8x4xf32>, vector<4x64xf32>, vector<8x64xf32> -> vector<8x64xf32>
    %21 = arith.addf %16, %20 : vector<8x64xf32>
    %c0_8 = arith.constant 0 : index
    %c0_9 = arith.constant 0 : index
    %c0_10 = arith.constant 0 : index
    %22 = vector.load %arg6[%c0_8, %c0_9, %c0_10] : memref<4x8x1xf32, #tpu.memory_space<vmem>>, vector<1x8x1xf32>
    %23 = vector.shape_cast %22 : vector<1x8x1xf32> to vector<8x1xf32>
    %24 = vector.broadcast %23 : vector<8x1xf32> to vector<8x64xf32>
    %25 = arith.addf %21, %24 : vector<8x64xf32>
    %cst_11 = arith.constant 0.000000e+00 : f32
    %26 = vector.broadcast %cst_11 : f32 to vector<8x64xf32>
    %27 = arith.maximumf %25, %26 : vector<8x64xf32>
    %c0_12 = arith.constant 0 : index
    %c0_13 = arith.constant 0 : index
    %c0_14 = arith.constant 0 : index
    %28 = vector.load %arg3[%c0_12, %c0_13, %c0_14] : memref<4x8x8xf32, #tpu.memory_space<vmem>>, vector<4x8x8xf32>
    %29 = vector.extract_strided_slice %28 {offsets = [0, 0, 0], sizes = [1, 8, 8], strides = [1, 1, 1]} : vector<4x8x8xf32> to vector<1x8x8xf32>
    %30 = vector.shape_cast %29 : vector<1x8x8xf32> to vector<8x8xf32>
    %31 = vector.extract_strided_slice %27 {offsets = [0, 0], sizes = [8, 16], strides = [1, 1]} : vector<8x64xf32> to vector<8x16xf32>
    %cst_15 = arith.constant dense<0.000000e+00> : vector<8x16xf32>
    %32 = tpu.matmul %30, %31, %cst_15 {dimension_numbers = #tpu.dot_dimension_numbers<[1], [0], [0], [1], [0, 0, 1, 1], [], []>} : vector<8x8xf32>, vector<8x16xf32>, vector<8x16xf32> -> vector<8x16xf32>
    %33 = vector.extract_strided_slice %28 {offsets = [1, 0, 0], sizes = [1, 8, 8], strides = [1, 1, 1]} : vector<4x8x8xf32> to vector<1x8x8xf32>
    %34 = vector.shape_cast %33 : vector<1x8x8xf32> to vector<8x8xf32>
    %35 = vector.extract_strided_slice %27 {offsets = [0, 16], sizes = [8, 16], strides = [1, 1]} : vector<8x64xf32> to vector<8x16xf32>
    %cst_16 = arith.constant dense<0.000000e+00> : vector<8x16xf32>
    %36 = tpu.matmul %34, %35, %cst_16 {dimension_numbers = #tpu.dot_dimension_numbers<[1], [0], [0], [1], [0, 0, 1, 1], [], []>} : vector<8x8xf32>, vector<8x16xf32>, vector<8x16xf32> -> vector<8x16xf32>
    %37 = arith.addf %32, %36 : vector<8x16xf32>
    %38 = vector.extract_strided_slice %28 {offsets = [2, 0, 0], sizes = [1, 8, 8], strides = [1, 1, 1]} : vector<4x8x8xf32> to vector<1x8x8xf32>
    %39 = vector.shape_cast %38 : vector<1x8x8xf32> to vector<8x8xf32>
    %40 = vector.extract_strided_slice %27 {offsets = [0, 32], sizes = [8, 16], strides = [1, 1]} : vector<8x64xf32> to vector<8x16xf32>
    %cst_17 = arith.constant dense<0.000000e+00> : vector<8x16xf32>
    %41 = tpu.matmul %39, %40, %cst_17 {dimension_numbers = #tpu.dot_dimension_numbers<[1], [0], [0], [1], [0, 0, 1, 1], [], []>} : vector<8x8xf32>, vector<8x16xf32>, vector<8x16xf32> -> vector<8x16xf32>
    %42 = arith.addf %37, %41 : vector<8x16xf32>
    %43 = vector.extract_strided_slice %28 {offsets = [3, 0, 0], sizes = [1, 8, 8], strides = [1, 1, 1]} : vector<4x8x8xf32> to vector<1x8x8xf32>
    %44 = vector.shape_cast %43 : vector<1x8x8xf32> to vector<8x8xf32>
    %45 = vector.extract_strided_slice %27 {offsets = [0, 48], sizes = [8, 16], strides = [1, 1]} : vector<8x64xf32> to vector<8x16xf32>
    %cst_18 = arith.constant dense<0.000000e+00> : vector<8x16xf32>
    %46 = tpu.matmul %44, %45, %cst_18 {dimension_numbers = #tpu.dot_dimension_numbers<[1], [0], [0], [1], [0, 0, 1, 1], [], []>} : vector<8x8xf32>, vector<8x16xf32>, vector<8x16xf32> -> vector<8x16xf32>
    %47 = arith.addf %42, %46 : vector<8x16xf32>
    %c1 = arith.constant 1 : index
    %c0_19 = arith.constant 0 : index
    %c0_20 = arith.constant 0 : index
    %48 = vector.load %arg6[%c1, %c0_19, %c0_20] : memref<4x8x1xf32, #tpu.memory_space<vmem>>, vector<1x8x1xf32>
    %49 = vector.shape_cast %48 : vector<1x8x1xf32> to vector<8x1xf32>
    %50 = vector.broadcast %49 : vector<8x1xf32> to vector<8x16xf32>
    %51 = arith.addf %47, %50 : vector<8x16xf32>
    %cst_21 = arith.constant 0.000000e+00 : f32
    %52 = vector.broadcast %cst_21 : f32 to vector<8x16xf32>
    %53 = arith.maximumf %51, %52 : vector<8x16xf32>
    %c0_22 = arith.constant 0 : index
    %c0_23 = arith.constant 0 : index
    %c0_24 = arith.constant 0 : index
    %54 = vector.load %arg4[%c0_22, %c0_23, %c0_24] : memref<4x8x8xf32, #tpu.memory_space<vmem>>, vector<4x8x8xf32>
    %55 = vector.extract_strided_slice %54 {offsets = [0, 0, 0], sizes = [1, 8, 8], strides = [1, 1, 1]} : vector<4x8x8xf32> to vector<1x8x8xf32>
    %56 = vector.shape_cast %55 : vector<1x8x8xf32> to vector<8x8xf32>
    %57 = vector.extract_strided_slice %53 {offsets = [0, 0], sizes = [8, 4], strides = [1, 1]} : vector<8x16xf32> to vector<8x4xf32>
    %cst_25 = arith.constant dense<0.000000e+00> : vector<8x4xf32>
    %58 = tpu.matmul %56, %57, %cst_25 {dimension_numbers = #tpu.dot_dimension_numbers<[1], [0], [0], [1], [0, 0, 1, 1], [], []>} : vector<8x8xf32>, vector<8x4xf32>, vector<8x4xf32> -> vector<8x4xf32>
    %59 = vector.extract_strided_slice %54 {offsets = [1, 0, 0], sizes = [1, 8, 8], strides = [1, 1, 1]} : vector<4x8x8xf32> to vector<1x8x8xf32>
    %60 = vector.shape_cast %59 : vector<1x8x8xf32> to vector<8x8xf32>
    %61 = vector.extract_strided_slice %53 {offsets = [0, 4], sizes = [8, 4], strides = [1, 1]} : vector<8x16xf32> to vector<8x4xf32>
    %cst_26 = arith.constant dense<0.000000e+00> : vector<8x4xf32>
    %62 = tpu.matmul %60, %61, %cst_26 {dimension_numbers = #tpu.dot_dimension_numbers<[1], [0], [0], [1], [0, 0, 1, 1], [], []>} : vector<8x8xf32>, vector<8x4xf32>, vector<8x4xf32> -> vector<8x4xf32>
    %63 = arith.addf %58, %62 : vector<8x4xf32>
    %64 = vector.extract_strided_slice %54 {offsets = [2, 0, 0], sizes = [1, 8, 8], strides = [1, 1, 1]} : vector<4x8x8xf32> to vector<1x8x8xf32>
    %65 = vector.shape_cast %64 : vector<1x8x8xf32> to vector<8x8xf32>
    %66 = vector.extract_strided_slice %53 {offsets = [0, 8], sizes = [8, 4], strides = [1, 1]} : vector<8x16xf32> to vector<8x4xf32>
    %cst_27 = arith.constant dense<0.000000e+00> : vector<8x4xf32>
    %67 = tpu.matmul %65, %66, %cst_27 {dimension_numbers = #tpu.dot_dimension_numbers<[1], [0], [0], [1], [0, 0, 1, 1], [], []>} : vector<8x8xf32>, vector<8x4xf32>, vector<8x4xf32> -> vector<8x4xf32>
    %68 = arith.addf %63, %67 : vector<8x4xf32>
    %69 = vector.extract_strided_slice %54 {offsets = [3, 0, 0], sizes = [1, 8, 8], strides = [1, 1, 1]} : vector<4x8x8xf32> to vector<1x8x8xf32>
    %70 = vector.shape_cast %69 : vector<1x8x8xf32> to vector<8x8xf32>
    %71 = vector.extract_strided_slice %53 {offsets = [0, 12], sizes = [8, 4], strides = [1, 1]} : vector<8x16xf32> to vector<8x4xf32>
    %cst_28 = arith.constant dense<0.000000e+00> : vector<8x4xf32>
    %72 = tpu.matmul %70, %71, %cst_28 {dimension_numbers = #tpu.dot_dimension_numbers<[1], [0], [0], [1], [0, 0, 1, 1], [], []>} : vector<8x8xf32>, vector<8x4xf32>, vector<8x4xf32> -> vector<8x4xf32>
    %73 = arith.addf %68, %72 : vector<8x4xf32>
    %c2 = arith.constant 2 : index
    %c0_29 = arith.constant 0 : index
    %c0_30 = arith.constant 0 : index
    %74 = vector.load %arg6[%c2, %c0_29, %c0_30] : memref<4x8x1xf32, #tpu.memory_space<vmem>>, vector<1x8x1xf32>
    %75 = vector.shape_cast %74 : vector<1x8x1xf32> to vector<8x1xf32>
    %76 = vector.broadcast %75 : vector<8x1xf32> to vector<8x4xf32>
    %77 = arith.addf %73, %76 : vector<8x4xf32>
    %cst_31 = arith.constant 0.000000e+00 : f32
    %78 = vector.broadcast %cst_31 : f32 to vector<8x4xf32>
    %79 = arith.maximumf %77, %78 : vector<8x4xf32>
    %c0_32 = arith.constant 0 : index
    %c0_33 = arith.constant 0 : index
    %c0_34 = arith.constant 0 : index
    %80 = vector.load %arg5[%c0_32, %c0_33, %c0_34] : memref<4x8x8xf32, #tpu.memory_space<vmem>>, vector<4x8x8xf32>
    %81 = vector.extract_strided_slice %80 {offsets = [0, 0, 0], sizes = [1, 8, 8], strides = [1, 1, 1]} : vector<4x8x8xf32> to vector<1x8x8xf32>
    %82 = vector.shape_cast %81 : vector<1x8x8xf32> to vector<8x8xf32>
    %83 = vector.extract_strided_slice %79 {offsets = [0, 0], sizes = [8, 1], strides = [1, 1]} : vector<8x4xf32> to vector<8x1xf32>
    %cst_35 = arith.constant dense<0.000000e+00> : vector<8x1xf32>
    %84 = tpu.matmul %82, %83, %cst_35 {dimension_numbers = #tpu.dot_dimension_numbers<[1], [0], [0], [1], [0, 0, 1, 1], [], []>} : vector<8x8xf32>, vector<8x1xf32>, vector<8x1xf32> -> vector<8x1xf32>
    %85 = vector.extract_strided_slice %80 {offsets = [1, 0, 0], sizes = [1, 8, 8], strides = [1, 1, 1]} : vector<4x8x8xf32> to vector<1x8x8xf32>
    %86 = vector.shape_cast %85 : vector<1x8x8xf32> to vector<8x8xf32>
    %87 = vector.extract_strided_slice %79 {offsets = [0, 1], sizes = [8, 1], strides = [1, 1]} : vector<8x4xf32> to vector<8x1xf32>
    %cst_36 = arith.constant dense<0.000000e+00> : vector<8x1xf32>
    %88 = tpu.matmul %86, %87, %cst_36 {dimension_numbers = #tpu.dot_dimension_numbers<[1], [0], [0], [1], [0, 0, 1, 1], [], []>} : vector<8x8xf32>, vector<8x1xf32>, vector<8x1xf32> -> vector<8x1xf32>
    %89 = arith.addf %84, %88 : vector<8x1xf32>
    %90 = vector.extract_strided_slice %80 {offsets = [2, 0, 0], sizes = [1, 8, 8], strides = [1, 1, 1]} : vector<4x8x8xf32> to vector<1x8x8xf32>
    %91 = vector.shape_cast %90 : vector<1x8x8xf32> to vector<8x8xf32>
    %92 = vector.extract_strided_slice %79 {offsets = [0, 2], sizes = [8, 1], strides = [1, 1]} : vector<8x4xf32> to vector<8x1xf32>
    %cst_37 = arith.constant dense<0.000000e+00> : vector<8x1xf32>
    %93 = tpu.matmul %91, %92, %cst_37 {dimension_numbers = #tpu.dot_dimension_numbers<[1], [0], [0], [1], [0, 0, 1, 1], [], []>} : vector<8x8xf32>, vector<8x1xf32>, vector<8x1xf32> -> vector<8x1xf32>
    %94 = arith.addf %89, %93 : vector<8x1xf32>
    %95 = vector.extract_strided_slice %80 {offsets = [3, 0, 0], sizes = [1, 8, 8], strides = [1, 1, 1]} : vector<4x8x8xf32> to vector<1x8x8xf32>
    %96 = vector.shape_cast %95 : vector<1x8x8xf32> to vector<8x8xf32>
    %97 = vector.extract_strided_slice %79 {offsets = [0, 3], sizes = [8, 1], strides = [1, 1]} : vector<8x4xf32> to vector<8x1xf32>
    %cst_38 = arith.constant dense<0.000000e+00> : vector<8x1xf32>
    %98 = tpu.matmul %96, %97, %cst_38 {dimension_numbers = #tpu.dot_dimension_numbers<[1], [0], [0], [1], [0, 0, 1, 1], [], []>} : vector<8x8xf32>, vector<8x1xf32>, vector<8x1xf32> -> vector<8x1xf32>
    %99 = arith.addf %94, %98 : vector<8x1xf32>
    %c3 = arith.constant 3 : index
    %c0_39 = arith.constant 0 : index
    %c0_40 = arith.constant 0 : index
    %100 = vector.load %arg6[%c3, %c0_39, %c0_40] : memref<4x8x1xf32, #tpu.memory_space<vmem>>, vector<1x8x1xf32>
    %101 = vector.shape_cast %100 : vector<1x8x1xf32> to vector<8x1xf32>
    %102 = arith.addf %99, %101 : vector<8x1xf32>
    %cst_41 = arith.constant 0.000000e+00 : f32
    %103 = vector.broadcast %cst_41 : f32 to vector<8x1xf32>
    %104 = arith.maximumf %102, %103 : vector<8x1xf32>
    %c0_42 = arith.constant 0 : index
    %c0_43 = arith.constant 0 : index
    %c0_44 = arith.constant 0 : index
    %105 = vector.load %arg7[%c0_42, %c0_43, %c0_44] : memref<1x8x1xf32, #tpu.memory_space<vmem>>, vector<1x8x1xf32>
    %106 = vector.shape_cast %105 : vector<1x8x1xf32> to vector<8x1xf32>
    %107 = vector.shape_cast %104 : vector<8x1xf32> to vector<1x8x1xf32>
    tpu.vector_store %arg7[%c0_42, %c0_43, %c0_44], %107 {strides = array<i32>} : memref<1x8x1xf32, #tpu.memory_space<vmem>>, vector<1x8x1xf32>,
    return
  }
  func.func @transform_0(%arg0: i32) -> (i32, i32, i32) {
    %c0_i32 = arith.constant 0 : i32
    %c0_i32_0 = arith.constant 0 : i32
    %c0_i32_1 = arith.constant 0 : i32
    return %arg0, %c0_i32, %c0_i32_0 : i32, i32, i32
  }
  func.func @transform_1(%arg0: i32) -> (i32, i32, i32) {
    %c0_i32 = arith.constant 0 : i32
    %c0_i32_0 = arith.constant 0 : i32
    %c0_i32_1 = arith.constant 0 : i32
    %c0_i32_2 = arith.constant 0 : i32
    return %c0_i32, %c0_i32_0, %c0_i32_1 : i32, i32, i32
  }
  func.func @transform_2(%arg0: i32) -> (i32, i32, i32) {
    %c0_i32 = arith.constant 0 : i32
    %c0_i32_0 = arith.constant 0 : i32
    %c0_i32_1 = arith.constant 0 : i32
    %c0_i32_2 = arith.constant 0 : i32
    return %c0_i32, %c0_i32_0, %c0_i32_1 : i32, i32, i32
  }
  func.func @transform_3(%arg0: i32) -> (i32, i32, i32) {
    %c0_i32 = arith.constant 0 : i32
    %c0_i32_0 = arith.constant 0 : i32
    %c0_i32_1 = arith.constant 0 : i32
    %c0_i32_2 = arith.constant 0 : i32
    return %c0_i32, %c0_i32_0, %c0_i32_1 : i32, i32, i32
  }
  func.func @transform_4(%arg0: i32) -> (i32, i32, i32) {
    %c0_i32 = arith.constant 0 : i32
    %c0_i32_0 = arith.constant 0 : i32
    %c0_i32_1 = arith.constant 0 : i32
    %c0_i32_2 = arith.constant 0 : i32
    return %c0_i32, %c0_i32_0, %c0_i32_1 : i32, i32, i32
  }
  func.func @transform_5(%arg0: i32) -> (i32, i32, i32) {
    %c0_i32 = arith.constant 0 : i32
    %c0_i32_0 = arith.constant 0 : i32
    %c0_i32_1 = arith.constant 0 : i32
    %c0_i32_2 = arith.constant 0 : i32
    return %c0_i32, %c0_i32_0, %c0_i32_1 : i32, i32, i32
  }
  func.func @transform_6(%arg0: i32) -> (i32, i32, i32) {
    %c0_i32 = arith.constant 0 : i32
    %c0_i32_0 = arith.constant 0 : i32
    %c0_i32_1 = arith.constant 0 : i32
    return %arg0, %c0_i32, %c0_i32_0 : i32, i32, i32
  }
}

</mosaic_0001>

<llo_original>
// kernel: _lambda_.1
$region0: #{_lambda_.1}
  #allocation0 [shape = 'u32[]', space=smem, size = 0x4, offset = 0x4, fixed_abs, tag = 'smem constant byte address 0x4 - core index']
  #allocation1 [shape = 'u32[144,128]{1,0:T(1,128)}', space=vmem, size = 0x12000, scoped, tag = 'internal scratch']
  %s0 = inlined_call_operand.vmem [shape: f32[2,4,256], index: 0, kind: input, shape index: {}]
  %s1 = inlined_call_operand.vmem [shape: f32[4,8,4], index: 1, kind: input, shape index: {}]
  %s2 = inlined_call_operand.vmem [shape: f32[4,8,8], index: 2, kind: input, shape index: {}]
  %s3 = inlined_call_operand.vmem [shape: f32[4,8,8], index: 3, kind: input, shape index: {}]
  %s4 = inlined_call_operand.vmem [shape: f32[4,8,8], index: 4, kind: input, shape index: {}]
  %s5 = inlined_call_operand.vmem [shape: f32[4,8,1], index: 5, kind: input, shape index: {}]
  %s6 = inlined_call_operand.vmem [shape: f32[2,8,1], index: 6, kind: output, shape index: {}]
  %s7 = sld [smem:[#allocation0]]
  $region57: #{_lambda_.1} parent=0
    _
  %s9 = ssub.s32 1, %s7
  %s10 = scalar_select 0, %s9, %s7
  loop: start=0, step=1, limit=4
  $region2: #{_lambda_.1} parent=0 // loop_pre_header
    _
  $region3: #{_lambda_.1} parent=0 // loop_header
    %s12 = sphi 0, %s16
    %p13 = scmp.ge.s32.totalorder %s12, 4
    %s22 = sphi 0, %s24
    %s25 = sphi 0, %s22
    %s26 = sphi 0, %s25
    %s42 = sphi 0, %s26
    %s46 = sphi 0, %s46
    %s48 = sphi 0, %s46
    %s49 = sphi 0, %s48
    %s63 = sphi 0, %s49
    %s67 = sphi 0, %s67
    %s69 = sphi 0, %s67
    %s70 = sphi 0, %s69
    %s84 = sphi 0, %s70
    %s88 = sphi 0, %s88
    %s90 = sphi 0, %s88
    %s91 = sphi 0, %s90
    %s105 = sphi 0, %s91
    %s109 = sphi 0, %s109
    %s111 = sphi 0, %s109
    %s112 = sphi 0, %s111
    %s126 = sphi 0, %s112
    %s130 = sphi 0, %s130
    %s132 = sphi 0, %s130
    %s133 = sphi 0, %s132
    %s147 = sphi 0, %s133
    %s153 = sphi 0, %s155
    %s156 = sphi 0, %s153
    %s157 = sphi 0, %s156
    %s173 = sphi 0, %s157
  $region4: #{_lambda_.1} parent=0 // loop_header_branch
    %15 = sbr.rel (%p13) target = $region8
  $region5: #{_lambda_.1} parent=0 // loop_body
    %s17 = ssub.s32 %s12, 1
    %s18 = ssub.s32 %s12, 2
    %s19 = sadd.s32 %s12, 1
    %s20 = ssub.s32 %s12, %s19
    %p21 = scmp.eq.s32.totalorder %s20, 0
    %s23 = sadd.s32 %s22, 1
    %s24 = scalar_select %p21, %s22, %s23
    %p27 = pneg %p21
    %p28 = scmp.eq.s32.totalorder %s12, 1
    %p29 = por %p27, %p28
    %p30 = scmp.ne.s32.totalorder %s22, %s25
    %p31 = scmp.eq.s32.totalorder %s12, 0
    %p32 = por %p30, %p31
    %p33 = scmp.ne.s32.totalorder %s22, %s25
    %p34 = scmp.eq.s32.totalorder %s17, 1
    %p35 = por %p33, %p34
    %p36 = scmp.ne.s32.totalorder %s25, %s26
    %p37 = scmp.eq.s32.totalorder %s17, 0
    %p38 = por %p36, %p37
    %p39 = scmp.ne.s32.totalorder %s25, %s26
    %p40 = scmp.eq.s32.totalorder %s18, 1
    %p41 = por %p39, %p40
    %p43 = scmp.ne.s32.totalorder %s26, %s42
    %p44 = scmp.eq.s32.totalorder %s18, 0
    %p45 = por %p43, %p44
    %s47 = sadd.s32 %s46, 1
    %p50 = scmp.eq.s32.totalorder %s12, 1
    %p51 = scmp.ne.s32.totalorder %s46, %s48
    %p52 = scmp.eq.s32.totalorder %s12, 0
    %p53 = por %p51, %p52
    %p54 = scmp.ne.s32.totalorder %s46, %s48
    %p55 = scmp.eq.s32.totalorder %s17, 1
    %p56 = por %p54, %p55
    %p57 = scmp.ne.s32.totalorder %s48, %s49
    %p58 = scmp.eq.s32.totalorder %s17, 0
    %p59 = por %p57, %p58
    %p60 = scmp.ne.s32.totalorder %s48, %s49
    %p61 = scmp.eq.s32.totalorder %s18, 1
    %p62 = por %p60, %p61
    %p64 = scmp.ne.s32.totalorder %s49, %s63
    %p65 = scmp.eq.s32.totalorder %s18, 0
    %p66 = por %p64, %p65
    %s68 = sadd.s32 %s67, 1
    %p71 = scmp.eq.s32.totalorder %s12, 1
    %p72 = scmp.ne.s32.totalorder %s67, %s69
    %p73 = scmp.eq.s32.totalorder %s12, 0
    %p74 = por %p72, %p73
    %p75 = scmp.ne.s32.totalorder %s67, %s69
    %p76 = scmp.eq.s32.totalorder %s17, 1
    %p77 = por %p75, %p76
    %p78 = scmp.ne.s32.totalorder %s69, %s70
    %p79 = scmp.eq.s32.totalorder %s17, 0
    %p80 = por %p78, %p79
    %p81 = scmp.ne.s32.totalorder %s69, %s70
    %p82 = scmp.eq.s32.totalorder %s18, 1
    %p83 = por %p81, %p82
    %p85 = scmp.ne.s32.totalorder %s70, %s84
    %p86 = scmp.eq.s32.totalorder %s18, 0
    %p87 = por %p85, %p86
    %s89 = sadd.s32 %s88, 1
    %p92 = scmp.eq.s32.totalorder %s12, 1
    %p93 = scmp.ne.s32.totalorder %s88, %s90
    %p94 = scmp.eq.s32.totalorder %s12, 0
    %p95 = por %p93, %p94
    %p96 = scmp.ne.s32.totalorder %s88, %s90
    %p97 = scmp.eq.s32.totalorder %s17, 1
    %p98 = por %p96, %p97
    %p99 = scmp.ne.s32.totalorder %s90, %s91
    %p100 = scmp.eq.s32.totalorder %s17, 0
    %p101 = por %p99, %p100
    %p102 = scmp.ne.s32.totalorder %s90, %s91
    %p103 = scmp.eq.s32.totalorder %s18, 1
    %p104 = por %p102, %p103
    %p106 = scmp.ne.s32.totalorder %s91, %s105
    %p107 = scmp.eq.s32.totalorder %s18, 0
    %p108 = por %p106, %p107
    %s110 = sadd.s32 %s109, 1
    %p113 = scmp.eq.s32.totalorder %s12, 1
    %p114 = scmp.ne.s32.totalorder %s109, %s111
    %p115 = scmp.eq.s32.totalorder %s12, 0
    %p116 = por %p114, %p115
    %p117 = scmp.ne.s32.totalorder %s109, %s111
    %p118 = scmp.eq.s32.totalorder %s17, 1
    %p119 = por %p117, %p118
    %p120 = scmp.ne.s32.totalorder %s111, %s112
    %p121 = scmp.eq.s32.totalorder %s17, 0
    %p122 = por %p120, %p121
    %p123 = scmp.ne.s32.totalorder %s111, %s112
    %p124 = scmp.eq.s32.totalorder %s18, 1
    %p125 = por %p123, %p124
    %p127 = scmp.ne.s32.totalorder %s112, %s126
    %p128 = scmp.eq.s32.totalorder %s18, 0
    %p129 = por %p127, %p128
    %s131 = sadd.s32 %s130, 1
    %p134 = scmp.eq.s32.totalorder %s12, 1
    %p135 = scmp.ne.s32.totalorder %s130, %s132
    %p136 = scmp.eq.s32.totalorder %s12, 0
    %p137 = por %p135, %p136
    %p138 = scmp.ne.s32.totalorder %s130, %s132
    %p139 = scmp.eq.s32.totalorder %s17, 1
    %p140 = por %p138, %p139
    %p141 = scmp.ne.s32.totalorder %s132, %s133
    %p142 = scmp.eq.s32.totalorder %s17, 0
    %p143 = por %p141, %p142
    %p144 = scmp.ne.s32.totalorder %s132, %s133
    %p145 = scmp.eq.s32.totalorder %s18, 1
    %p146 = por %p144, %p145
    %p148 = scmp.ne.s32.totalorder %s133, %s147
    %p149 = scmp.eq.s32.totalorder %s18, 0
    %p150 = por %p148, %p149
    %s151 = ssub.s32 %s12, %s19
    %p152 = scmp.eq.s32.totalorder %s151, 0
    %s154 = sadd.s32 %s153, 1
    %s155 = scalar_select %p152, %s153, %s154
    %p158 = pneg %p152
    %p159 = scmp.eq.s32.totalorder %s12, 1
    %p160 = por %p158, %p159
    %p161 = scmp.ne.s32.totalorder %s153, %s156
    %p162 = scmp.eq.s32.totalorder %s12, 0
    %p163 = por %p161, %p162
    %p164 = scmp.ne.s32.totalorder %s153, %s156
    %p165 = scmp.eq.s32.totalorder %s17, 1
    %p166 = por %p164, %p165
    %p167 = scmp.ne.s32.totalorder %s156, %s157
    %p168 = scmp.eq.s32.totalorder %s17, 0
    %p169 = por %p167, %p168
    %p170 = scmp.ne.s32.totalorder %s156, %s157
    %p171 = scmp.eq.s32.totalorder %s18, 1
    %p172 = por %p170, %p171
    %p174 = scmp.ne.s32.totalorder %s157, %s173
    %p175 = scmp.eq.s32.totalorder %s18, 0
    %p176 = por %p174, %p175
    %p177 = scmp.le.s32.totalorder 1, %s12
    %p178 = scmp.lt.s32.totalorder %s12, 3
    %p179 = pnand %p177, %p178
    %p180 = pneg %p179
    // Predicated region
    $region9: #{_lambda_.1} parent=5 // pred_check
      _
    $region10: #{_lambda_.1} parent=5 // pred_check_branch
      %182 = sbr.rel (%p179) target = $region12
    $region11: #{_lambda_.1} parent=5 // pred_region
      %s183 = ssub.s32 %s12, 1
      // Predicated region
      $region13: #{_lambda_.1} parent=11 // pred_check
        %p184 = pneg %p59
      $region14: #{_lambda_.1} parent=11 // pred_check_branch
        %186 = sbr.rel (%p184) target = $region16
      $region15: #{_lambda_.1} parent=11 // pred_region
        _
      $region16: #{_lambda_.1} parent=11 // pred_fallthru
        _
      // Predicated region
      $region17: #{_lambda_.1} parent=11 // pred_check
        %p187 = pneg %p80
      $region18: #{_lambda_.1} parent=11 // pred_check_branch
        %189 = sbr.rel (%p187) target = $region20
      $region19: #{_lambda_.1} parent=11 // pred_region
        _
      $region20: #{_lambda_.1} parent=11 // pred_fallthru
        _
      // Predicated region
      $region21: #{_lambda_.1} parent=11 // pred_check
        %p190 = pneg %p101
      $region22: #{_lambda_.1} parent=11 // pred_check_branch
        %192 = sbr.rel (%p190) target = $region24
      $region23: #{_lambda_.1} parent=11 // pred_region
        _
      $region24: #{_lambda_.1} parent=11 // pred_fallthru
        _
      // Predicated region
      $region25: #{_lambda_.1} parent=11 // pred_check
        %p193 = pneg %p122
      $region26: #{_lambda_.1} parent=11 // pred_check_branch
        %195 = sbr.rel (%p193) target = $region28
      $region27: #{_lambda_.1} parent=11 // pred_region
        _
      $region28: #{_lambda_.1} parent=11 // pred_fallthru
        _
      // Predicated region
      $region29: #{_lambda_.1} parent=11 // pred_check
        %p196 = pneg %p143
      $region30: #{_lambda_.1} parent=11 // pred_check_branch
        %198 = sbr.rel (%p196) target = $region32
      $region31: #{_lambda_.1} parent=11 // pred_region
        _
      $region32: #{_lambda_.1} parent=11 // pred_fallthru
        _
    $region12: #{_lambda_.1} parent=5 // pred_fallthru
      _
    %p199 = scmp.lt.s32.totalorder %s12, 2
    // Predicated region
    $region33: #{_lambda_.1} parent=5 // pred_check
      %p200 = pneg %p199
    $region34: #{_lambda_.1} parent=5 // pred_check_branch
      %202 = sbr.rel (%p200) target = $region36
    $region35: #{_lambda_.1} parent=5 // pred_region
      // Predicated region
      $region37: #{_lambda_.1} parent=35 // pred_check
        %p203 = pneg %p32
      $region38: #{_lambda_.1} parent=35 // pred_check_branch
        %205 = sbr.rel (%p203) target = $region40
      $region39: #{_lambda_.1} parent=35 // pred_region
        %p206 = scmp.lt.s32.totalorder %s12, 1
        %s207 = scalar_select %p206, %s12, 1
        %s208 = smul.addr %s207, 2
        %s209 = smul.addr %s208, 4
        %s210 = scalar_lea.vmem %s0, %s209
      $region40: #{_lambda_.1} parent=35 // pred_fallthru
        _
    $region36: #{_lambda_.1} parent=5 // pred_fallthru
      _
    %p211 = scmp.le.s32.totalorder 1, %s12
    %p212 = scmp.lt.s32.totalorder %s12, 3
    %p213 = pnand %p211, %p212
    %p214 = pneg %p213
    // Predicated region
    $region41: #{_lambda_.1} parent=5 // pred_check
      _
    $region42: #{_lambda_.1} parent=5 // pred_check_branch
      %216 = sbr.rel (%p213) target = $region44
    $region43: #{_lambda_.1} parent=5 // pred_region
      %s217 = ssub.s32 %s12, 1
      %p218 = scmp.lt.s32.totalorder %s17, 1
      %s219 = scalar_select %p218, %s17, 1
      %s220 = smul.addr %s219, 2
      %s221 = smul.addr %s220, 4
      %s222 = scalar_lea.vmem %s0, %s221
      %p223 = pneg %p38
      %p224 = pneg %p35
      %p225 = pneg %p59
      %p226 = pneg %p56
      %p227 = pneg %p80
      %p228 = pneg %p77
      %p229 = pneg %p101
      %p230 = pneg %p98
      %p231 = pneg %p122
      %p232 = pneg %p119
      %p233 = pneg %p143
      %p234 = pneg %p140
      %p235 = pneg %p169
      %p236 = pneg %p166
      %p237 = scmp.lt.s32.totalorder %s17, 1
      %s238 = scalar_select %p237, %s17, 1
      %s239 = smul.addr %s238, 8
      %s240 = scalar_lea.vmem %s6, %s239
      %p241 = scmp.lt.s32.totalorder %s17, 1
      %s242 = scalar_select %p241, %s17, 1
      %s243 = smul.addr %s242, 2
      %s244 = smul.addr %s243, 4
      %s245 = scalar_lea.vmem %s0, %s244
      %p246 = scmp.lt.s32.totalorder %s17, 1
      %s247 = scalar_select %p246, %s17, 1
      %s248 = smul.addr %s247, 8
      %s249 = scalar_lea.vmem %s6, %s248
      %v250 = vld [vmem:[%s245] sm:$0xff]
      %v251 = vld [vmem:[%s1] sm:$0xff]
      %v252 = vld [vmem:[%s1 + $0x8] sm:$0xff]
      %v253 = vld [vmem:[%s1 + $0x10] sm:$0xff]
      %v254 = vld [vmem:[%s1 + $0x18] sm:$0xff]
      %256 = vrot.lane.b32.xlu0 %v250, 64
      %v257 = vpop.permute.xlu0 %256
      %vm258 = vcmask 31744
      %v260 = vsel %vm258, %v252, 0
      %vm262 = vcmask 1043456
      %v263 = vsel %vm262, %v257, 0
      %265 = vmatprep.subr.mxu0 0.0
      %266 = vmatpush1.msra.mxu0 0.0
      %267 = vmatprep.subr.mxu0 0.0
      %268 = vmatpush1.msra.mxu0 0.0
      %269 = vmatprep.subr.mxu0 0.0
      %270 = vmatpush1.msra.mxu0 0.0
      %271 = vmatprep.subr.mxu0 0.0
      %272 = vmatpush1.msra.mxu0 0.0
      %273 = vmatprep.subr.mxu0 0.0
      %274 = vmatpush1.msra.mxu0 0.0
      %275 = vmatprep.subr.mxu0 0.0
      %276 = vmatpush1.msra.mxu0 0.0
      %277 = vmatprep.subr.mxu0 0.0
      %278 = vmatpush1.msra.mxu0 0.0
      %279 = vmatprep.subr.mxu0 0.0
      %280 = vmatpush1.msra.mxu0 0.0
      %281 = vmatprep.subr.mxu0 0.0
      %282 = vmatpush1.msra.mxu0 0.0
      %283 = vmatprep.subr.mxu0 0.0
      %284 = vmatpush1.msra.mxu0 0.0
      %285 = vmatprep.subr.mxu0 0.0
      %286 = vmatpush1.msra.mxu0 0.0
      %287 = vmatprep.subr.mxu0 0.0
      %288 = vmatpush1.msra.mxu0 0.0
      %289 = vmatprep.subr.mxu0 0.0
      %290 = vmatpush1.msra.mxu0 0.0
      %291 = vmatprep.subr.mxu0 0.0
      %292 = vmatpush1.msra.mxu0 0.0
      %293 = vmatprep.subr.mxu0 0.0
      %294 = vmatpush1.msra.mxu0 0.0
      %295 = vmatprep.subr.mxu0 0.0
      %296 = vmatpush1.msra.mxu0 %v263
      %297 = vmatprep.subr.mxu0 0.0
      %298 = vmatpush2.msra.mxu0 0.0
      %299 = vmatprep.subr.mxu0 0.0
      %300 = vmatpush2.msra.mxu0 0.0
      %301 = vmatprep.subr.mxu0 0.0
      %302 = vmatpush2.msra.mxu0 0.0
      %303 = vmatprep.subr.mxu0 0.0
      %304 = vmatpush2.msra.mxu0 0.0
      %305 = vmatprep.subr.mxu0 0.0
      %306 = vmatpush2.msra.mxu0 0.0
      %307 = vmatprep.subr.mxu0 0.0
      %308 = vmatpush2.msra.mxu0 0.0
      %309 = vmatprep.subr.mxu0 0.0
      %310 = vmatpush2.msra.mxu0 0.0
      %311 = vmatprep.subr.mxu0 0.0
      %312 = vmatpush2.msra.mxu0 0.0
      %313 = vmatprep.subr.mxu0 0.0
      %314 = vmatpush2.msra.mxu0 0.0
      %315 = vmatprep.subr.mxu0 0.0
      %316 = vmatpush2.msra.mxu0 0.0
      %317 = vmatprep.subr.mxu0 0.0
      %318 = vmatpush2.msra.mxu0 0.0
      %319 = vmatprep.subr.mxu0 0.0
      %320 = vmatpush2.msra.mxu0 0.0
      %321 = vmatprep.subr.mxu0 0.0
      %322 = vmatpush2.msra.mxu0 0.0
      %323 = vmatprep.subr.mxu0 0.0
      %324 = vmatpush2.msra.mxu0 0.0
      %325 = vmatprep.subr.mxu0 0.0
      %326 = vmatpush2.msra.mxu0 0.0
      %327 = vmatprep.subr.mxu0 0.0
      %328 = vmatpush2.msra.mxu0 0.0
      %329 = vmatprep.mubr.f32.mxu0 0.0
      %330 = vmatmul.mubr.f32.gmra.mxu0 %v260
      %v331 = vpop.f32.mrf.mxu0
      %v332 = vadd.f32 0.0, %v331
      %v333 = vpop.f32.mrf.mxu0
      %334 = vdwg.mxu0
      %v336 = vsel %vm258, %v251, 0
      %v338 = vsel %vm262, %v250, 0
      %340 = vmatprep.subr.mxu0 0.0
      %341 = vmatpush1.msra.mxu0 0.0
      %342 = vmatprep.subr.mxu0 0.0
      %343 = vmatpush1.msra.mxu0 0.0
      %344 = vmatprep.subr.mxu0 0.0
      %345 = vmatpush1.msra.mxu0 0.0
      %346 = vmatprep.subr.mxu0 0.0
      %347 = vmatpush1.msra.mxu0 0.0
      %348 = vmatprep.subr.mxu0 0.0
      %349 = vmatpush1.msra.mxu0 0.0
      %350 = vmatprep.subr.mxu0 0.0
      %351 = vmatpush1.msra.mxu0 0.0
      %352 = vmatprep.subr.mxu0 0.0
      %353 = vmatpush1.msra.mxu0 0.0
      %354 = vmatprep.subr.mxu0 0.0
      %355 = vmatpush1.msra.mxu0 0.0
      %356 = vmatprep.subr.mxu0 0.0
      %357 = vmatpush1.msra.mxu0 0.0
      %358 = vmatprep.subr.mxu0 0.0
      %359 = vmatpush1.msra.mxu0 0.0
      %360 = vmatprep.subr.mxu0 0.0
      %361 = vmatpush1.msra.mxu0 0.0
      %362 = vmatprep.subr.mxu0 0.0
      %363 = vmatpush1.msra.mxu0 0.0
      %364 = vmatprep.subr.mxu0 0.0
      %365 = vmatpush1.msra.mxu0 0.0
      %366 = vmatprep.subr.mxu0 0.0
      %367 = vmatpush1.msra.mxu0 0.0
      %368 = vmatprep.subr.mxu0 0.0
      %369 = vmatpush1.msra.mxu0 0.0
      %370 = vmatprep.subr.mxu0 0.0
      %371 = vmatpush1.msra.mxu0 %v338
      %372 = vmatprep.subr.mxu0 0.0
      %373 = vmatpush2.msra.mxu0 0.0
      %374 = vmatprep.subr.mxu0 0.0
      %375 = vmatpush2.msra.mxu0 0.0
      %376 = vmatprep.subr.mxu0 0.0
      %377 = vmatpush2.msra.mxu0 0.0
      %378 = vmatprep.subr.mxu0 0.0
      %379 = vmatpush2.msra.mxu0 0.0
      %380 = vmatprep.subr.mxu0 0.0
      %381 = vmatpush2.msra.mxu0 0.0
      %382 = vmatprep.subr.mxu0 0.0
      %383 = vmatpush2.msra.mxu0 0.0
      %384 = vmatprep.subr.mxu0 0.0
      %385 = vmatpush2.msra.mxu0 0.0
      %386 = vmatprep.subr.mxu0 0.0
      %387 = vmatpush2.msra.mxu0 0.0
      %388 = vmatprep.subr.mxu0 0.0
      %389 = vmatpush2.msra.mxu0 0.0
      %390 = vmatprep.subr.mxu0 0.0
      %391 = vmatpush2.msra.mxu0 0.0
      %392 = vmatprep.subr.mxu0 0.0
      %393 = vmatpush2.msra.mxu0 0.0
      %394 = vmatprep.subr.mxu0 0.0
      %395 = vmatpush2.msra.mxu0 0.0
      %396 = vmatprep.subr.mxu0 0.0
      %397 = vmatpush2.msra.mxu0 0.0
      %398 = vmatprep.subr.mxu0 0.0
      %399 = vmatpush2.msra.mxu0 0.0
      %400 = vmatprep.subr.mxu0 0.0
      %401 = vmatpush2.msra.mxu0 0.0
      %402 = vmatprep.subr.mxu0 0.0
      %403 = vmatpush2.msra.mxu0 0.0
      %404 = vmatprep.mubr.f32.mxu0 0.0
      %405 = vmatmul.mubr.f32.gmra.mxu0 %v336
      %v406 = vpop.f32.mrf.mxu0
      %v407 = vadd.f32 %v332, %v406
      %v408 = vpop.f32.mrf.mxu0
      %409 = vdwg.mxu0
      %v410 = vcombine.high %v250, %v250
      %v412 = vsel %vm258, %v253, 0
      %v414 = vsel %vm262, %v410, 0
      %416 = vmatprep.subr.mxu0 0.0
      %417 = vmatpush1.msra.mxu0 0.0
      %418 = vmatprep.subr.mxu0 0.0
      %419 = vmatpush1.msra.mxu0 0.0
      %420 = vmatprep.subr.mxu0 0.0
      %421 = vmatpush1.msra.mxu0 0.0
      %422 = vmatprep.subr.mxu0 0.0
      %423 = vmatpush1.msra.mxu0 0.0
      %424 = vmatprep.subr.mxu0 0.0
      %425 = vmatpush1.msra.mxu0 0.0
      %426 = vmatprep.subr.mxu0 0.0
      %427 = vmatpush1.msra.mxu0 0.0
      %428 = vmatprep.subr.mxu0 0.0
      %429 = vmatpush1.msra.mxu0 0.0
      %430 = vmatprep.subr.mxu0 0.0
      %431 = vmatpush1.msra.mxu0 0.0
      %432 = vmatprep.subr.mxu0 0.0
      %433 = vmatpush1.msra.mxu0 0.0
      %434 = vmatprep.subr.mxu0 0.0
      %435 = vmatpush1.msra.mxu0 0.0
      %436 = vmatprep.subr.mxu0 0.0
      %437 = vmatpush1.msra.mxu0 0.0
      %438 = vmatprep.subr.mxu0 0.0
      %439 = vmatpush1.msra.mxu0 0.0
      %440 = vmatprep.subr.mxu0 0.0
      %441 = vmatpush1.msra.mxu0 0.0
      %442 = vmatprep.subr.mxu0 0.0
      %443 = vmatpush1.msra.mxu0 0.0
      %444 = vmatprep.subr.mxu0 0.0
      %445 = vmatpush1.msra.mxu0 0.0
      %446 = vmatprep.subr.mxu0 0.0
      %447 = vmatpush1.msra.mxu0 %v414
      %448 = vmatprep.subr.mxu0 0.0
      %449 = vmatpush2.msra.mxu0 0.0
      %450 = vmatprep.subr.mxu0 0.0
      %451 = vmatpush2.msra.mxu0 0.0
      %452 = vmatprep.subr.mxu0 0.0
      %453 = vmatpush2.msra.mxu0 0.0
      %454 = vmatprep.subr.mxu0 0.0
      %455 = vmatpush2.msra.mxu0 0.0
      %456 = vmatprep.subr.mxu0 0.0
      %457 = vmatpush2.msra.mxu0 0.0
      %458 = vmatprep.subr.mxu0 0.0
      %459 = vmatpush2.msra.mxu0 0.0
      %460 = vmatprep.subr.mxu0 0.0
      %461 = vmatpush2.msra.mxu0 0.0
      %462 = vmatprep.subr.mxu0 0.0
      %463 = vmatpush2.msra.mxu0 0.0
      %464 = vmatprep.subr.mxu0 0.0
      %465 = vmatpush2.msra.mxu0 0.0
      %466 = vmatprep.subr.mxu0 0.0
      %467 = vmatpush2.msra.mxu0 0.0
      %468 = vmatprep.subr.mxu0 0.0
      %469 = vmatpush2.msra.mxu0 0.0
      %470 = vmatprep.subr.mxu0 0.0
      %471 = vmatpush2.msra.mxu0 0.0
      %472 = vmatprep.subr.mxu0 0.0
      %473 = vmatpush2.msra.mxu0 0.0
      %474 = vmatprep.subr.mxu0 0.0
      %475 = vmatpush2.msra.mxu0 0.0
      %476 = vmatprep.subr.mxu0 0.0
      %477 = vmatpush2.msra.mxu0 0.0
      %478 = vmatprep.subr.mxu0 0.0
      %479 = vmatpush2.msra.mxu0 0.0
      %480 = vmatprep.mubr.f32.mxu0 0.0
      %481 = vmatmul.mubr.f32.gmra.mxu0 %v412
      %v482 = vpop.f32.mrf.mxu0
      %v483 = vadd.f32 0.0, %v482
      %v484 = vpop.f32.mrf.mxu0
      %485 = vdwg.mxu0
      %v486 = vadd.f32 %v407, %v483
      %487 = vrot.lane.b32.xlu0 %v410, 64
      %v488 = vpop.permute.xlu0 %487
      %v490 = vsel %vm258, %v254, 0
      %v492 = vsel %vm262, %v488, 0
      %494 = vmatprep.subr.mxu0 0.0
      %495 = vmatpush1.msra.mxu0 0.0
      %496 = vmatprep.subr.mxu0 0.0
      %497 = vmatpush1.msra.mxu0 0.0
      %498 = vmatprep.subr.mxu0 0.0
      %499 = vmatpush1.msra.mxu0 0.0
      %500 = vmatprep.subr.mxu0 0.0
      %501 = vmatpush1.msra.mxu0 0.0
      %502 = vmatprep.subr.mxu0 0.0
      %503 = vmatpush1.msra.mxu0 0.0
      %504 = vmatprep.subr.mxu0 0.0
      %505 = vmatpush1.msra.mxu0 0.0
      %506 = vmatprep.subr.mxu0 0.0
      %507 = vmatpush1.msra.mxu0 0.0
      %508 = vmatprep.subr.mxu0 0.0
      %509 = vmatpush1.msra.mxu0 0.0
      %510 = vmatprep.subr.mxu0 0.0
      %511 = vmatpush1.msra.mxu0 0.0
      %512 = vmatprep.subr.mxu0 0.0
      %513 = vmatpush1.msra.mxu0 0.0
      %514 = vmatprep.subr.mxu0 0.0
      %515 = vmatpush1.msra.mxu0 0.0
      %516 = vmatprep.subr.mxu0 0.0
      %517 = vmatpush1.msra.mxu0 0.0
      %518 = vmatprep.subr.mxu0 0.0
      %519 = vmatpush1.msra.mxu0 0.0
      %520 = vmatprep.subr.mxu0 0.0
      %521 = vmatpush1.msra.mxu0 0.0
      %522 = vmatprep.subr.mxu0 0.0
      %523 = vmatpush1.msra.mxu0 0.0
      %524 = vmatprep.subr.mxu0 0.0
      %525 = vmatpush1.msra.mxu0 %v492
      %526 = vmatprep.subr.mxu0 0.0
      %527 = vmatpush2.msra.mxu0 0.0
      %528 = vmatprep.subr.mxu0 0.0
      %529 = vmatpush2.msra.mxu0 0.0
      %530 = vmatprep.subr.mxu0 0.0
      %531 = vmatpush2.msra.mxu0 0.0
      %532 = vmatprep.subr.mxu0 0.0
      %533 = vmatpush2.msra.mxu0 0.0
      %534 = vmatprep.subr.mxu0 0.0
      %535 = vmatpush2.msra.mxu0 0.0
      %536 = vmatprep.subr.mxu0 0.0
      %537 = vmatpush2.msra.mxu0 0.0
      %538 = vmatprep.subr.mxu0 0.0
      %539 = vmatpush2.msra.mxu0 0.0
      %540 = vmatprep.subr.mxu0 0.0
      %541 = vmatpush2.msra.mxu0 0.0
      %542 = vmatprep.subr.mxu0 0.0
      %543 = vmatpush2.msra.mxu0 0.0
      %544 = vmatprep.subr.mxu0 0.0
      %545 = vmatpush2.msra.mxu0 0.0
      %546 = vmatprep.subr.mxu0 0.0
      %547 = vmatpush2.msra.mxu0 0.0
      %548 = vmatprep.subr.mxu0 0.0
      %549 = vmatpush2.msra.mxu0 0.0
      %550 = vmatprep.subr.mxu0 0.0
      %551 = vmatpush2.msra.mxu0 0.0
      %552 = vmatprep.subr.mxu0 0.0
      %553 = vmatpush2.msra.mxu0 0.0
      %554 = vmatprep.subr.mxu0 0.0
      %555 = vmatpush2.msra.mxu0 0.0
      %556 = vmatprep.subr.mxu0 0.0
      %557 = vmatpush2.msra.mxu0 0.0
      %558 = vmatprep.mubr.f32.mxu0 0.0
      %559 = vmatmul.mubr.f32.gmra.mxu0 %v490
      %v560 = vpop.f32.mrf.mxu0
      %v561 = vadd.f32 0.0, %v560
      %v562 = vpop.f32.mrf.mxu0
      %563 = vdwg.mxu0
      %v564 = vadd.f32 %v486, %v561
      %v565 = vld [vmem:[%s5] sm:$0xff]
      %567 = vset.pattern.permute.xlu0 0
      %568 = vperm.xlu0 %567, %v565
      %v569 = vpop.permute.xlu0 %568
      %v571 = vadd.f32 %v564, %v569
      %v572 = vmax.f32 %v571, 0.0
      %v573 = vld [vmem:[%s2] sm:$0xff]
      %v574 = vld [vmem:[%s2 + $0x8] sm:$0xff]
      %v575 = vld [vmem:[%s2 + $0x10] sm:$0xff]
      %v576 = vld [vmem:[%s2 + $0x18] sm:$0xff]
      %578 = vrot.lane.b32.xlu0 %v572, 112
      %v579 = vpop.permute.xlu0 %578
      %vm581 = vcmask 64512
      %v583 = vsel %vm581, %v574, 0
      %585 = vmatprep.subr.mxu0 0.0
      %586 = vmatpush1.msra.mxu0 0.0
      %587 = vmatprep.subr.mxu0 0.0
      %588 = vmatpush1.msra.mxu0 0.0
      %589 = vmatprep.subr.mxu0 0.0
      %590 = vmatpush1.msra.mxu0 0.0
      %591 = vmatprep.subr.mxu0 0.0
      %592 = vmatpush1.msra.mxu0 0.0
      %593 = vmatprep.subr.mxu0 0.0
      %594 = vmatpush1.msra.mxu0 0.0
      %595 = vmatprep.subr.mxu0 0.0
      %596 = vmatpush1.msra.mxu0 0.0
      %597 = vmatprep.subr.mxu0 0.0
      %598 = vmatpush1.msra.mxu0 0.0
      %599 = vmatprep.subr.mxu0 0.0
      %600 = vmatpush1.msra.mxu0 0.0
      %601 = vmatprep.subr.mxu0 0.0
      %602 = vmatpush1.msra.mxu0 0.0
      %603 = vmatprep.subr.mxu0 0.0
      %604 = vmatpush1.msra.mxu0 0.0
      %605 = vmatprep.subr.mxu0 0.0
      %606 = vmatpush1.msra.mxu0 0.0
      %607 = vmatprep.subr.mxu0 0.0
      %608 = vmatpush1.msra.mxu0 0.0
      %609 = vmatprep.subr.mxu0 0.0
      %610 = vmatpush1.msra.mxu0 0.0
      %611 = vmatprep.subr.mxu0 0.0
      %612 = vmatpush1.msra.mxu0 0.0
      %613 = vmatprep.subr.mxu0 0.0
      %614 = vmatpush1.msra.mxu0 0.0
      %615 = vmatprep.subr.mxu0 0.0
      %616 = vmatpush1.msra.mxu0 %v579
      %617 = vmatprep.subr.mxu0 0.0
      %618 = vmatpush2.msra.mxu0 0.0
      %619 = vmatprep.subr.mxu0 0.0
      %620 = vmatpush2.msra.mxu0 0.0
      %621 = vmatprep.subr.mxu0 0.0
      %622 = vmatpush2.msra.mxu0 0.0
      %623 = vmatprep.subr.mxu0 0.0
      %624 = vmatpush2.msra.mxu0 0.0
      %625 = vmatprep.subr.mxu0 0.0
      %626 = vmatpush2.msra.mxu0 0.0
      %627 = vmatprep.subr.mxu0 0.0
      %628 = vmatpush2.msra.mxu0 0.0
      %629 = vmatprep.subr.mxu0 0.0
      %630 = vmatpush2.msra.mxu0 0.0
      %631 = vmatprep.subr.mxu0 0.0
      %632 = vmatpush2.msra.mxu0 0.0
      %633 = vmatprep.subr.mxu0 0.0
      %634 = vmatpush2.msra.mxu0 0.0
      %635 = vmatprep.subr.mxu0 0.0
      %636 = vmatpush2.msra.mxu0 0.0
      %637 = vmatprep.subr.mxu0 0.0
      %638 = vmatpush2.msra.mxu0 0.0
      %639 = vmatprep.subr.mxu0 0.0
      %640 = vmatpush2.msra.mxu0 0.0
      %641 = vmatprep.subr.mxu0 0.0
      %642 = vmatpush2.msra.mxu0 0.0
      %643 = vmatprep.subr.mxu0 0.0
      %644 = vmatpush2.msra.mxu0 0.0
      %645 = vmatprep.subr.mxu0 0.0
      %646 = vmatpush2.msra.mxu0 0.0
      %647 = vmatprep.subr.mxu0 0.0
      %648 = vmatpush2.msra.mxu0 0.0
      %649 = vmatprep.mubr.f32.mxu0 0.0
      %650 = vmatmul.mubr.f32.gmra.mxu0 %v583
      %v651 = vpop.f32.mrf.mxu0
      %v652 = vadd.f32 0.0, %v651
      %v653 = vpop.f32.mrf.mxu0
      %654 = vdwg.mxu0
      %v656 = vsel %vm581, %v573, 0
      %658 = vmatprep.subr.mxu0 0.0
      %659 = vmatpush1.msra.mxu0 0.0
      %660 = vmatprep.subr.mxu0 0.0
      %661 = vmatpush1.msra.mxu0 0.0
      %662 = vmatprep.subr.mxu0 0.0
      %663 = vmatpush1.msra.mxu0 0.0
      %664 = vmatprep.subr.mxu0 0.0
      %665 = vmatpush1.msra.mxu0 0.0
      %666 = vmatprep.subr.mxu0 0.0
      %667 = vmatpush1.msra.mxu0 0.0
      %668 = vmatprep.subr.mxu0 0.0
      %669 = vmatpush1.msra.mxu0 0.0
      %670 = vmatprep.subr.mxu0 0.0
      %671 = vmatpush1.msra.mxu0 0.0
      %672 = vmatprep.subr.mxu0 0.0
      %673 = vmatpush1.msra.mxu0 0.0
      %674 = vmatprep.subr.mxu0 0.0
      %675 = vmatpush1.msra.mxu0 0.0
      %676 = vmatprep.subr.mxu0 0.0
      %677 = vmatpush1.msra.mxu0 0.0
      %678 = vmatprep.subr.mxu0 0.0
      %679 = vmatpush1.msra.mxu0 0.0
      %680 = vmatprep.subr.mxu0 0.0
      %681 = vmatpush1.msra.mxu0 0.0
      %682 = vmatprep.subr.mxu0 0.0
      %683 = vmatpush1.msra.mxu0 0.0
      %684 = vmatprep.subr.mxu0 0.0
      %685 = vmatpush1.msra.mxu0 0.0
      %686 = vmatprep.subr.mxu0 0.0
      %687 = vmatpush1.msra.mxu0 0.0
      %688 = vmatprep.subr.mxu0 0.0
      %689 = vmatpush1.msra.mxu0 %v572
      %690 = vmatprep.subr.mxu0 0.0
      %691 = vmatpush2.msra.mxu0 0.0
      %692 = vmatprep.subr.mxu0 0.0
      %693 = vmatpush2.msra.mxu0 0.0
      %694 = vmatprep.subr.mxu0 0.0
      %695 = vmatpush2.msra.mxu0 0.0
      %696 = vmatprep.subr.mxu0 0.0
      %697 = vmatpush2.msra.mxu0 0.0
      %698 = vmatprep.subr.mxu0 0.0
      %699 = vmatpush2.msra.mxu0 0.0
      %700 = vmatprep.subr.mxu0 0.0
      %701 = vmatpush2.msra.mxu0 0.0
      %702 = vmatprep.subr.mxu0 0.0
      %703 = vmatpush2.msra.mxu0 0.0
      %704 = vmatprep.subr.mxu0 0.0
      %705 = vmatpush2.msra.mxu0 0.0
      %706 = vmatprep.subr.mxu0 0.0
      %707 = vmatpush2.msra.mxu0 0.0
      %708 = vmatprep.subr.mxu0 0.0
      %709 = vmatpush2.msra.mxu0 0.0
      %710 = vmatprep.subr.mxu0 0.0
      %711 = vmatpush2.msra.mxu0 0.0
      %712 = vmatprep.subr.mxu0 0.0
      %713 = vmatpush2.msra.mxu0 0.0
      %714 = vmatprep.subr.mxu0 0.0
      %715 = vmatpush2.msra.mxu0 0.0
      %716 = vmatprep.subr.mxu0 0.0
      %717 = vmatpush2.msra.mxu0 0.0
      %718 = vmatprep.subr.mxu0 0.0
      %719 = vmatpush2.msra.mxu0 0.0
      %720 = vmatprep.subr.mxu0 0.0
      %721 = vmatpush2.msra.mxu0 0.0
      %722 = vmatprep.mubr.f32.mxu0 0.0
      %723 = vmatmul.mubr.f32.gmra.mxu0 %v656
      %v724 = vpop.f32.mrf.mxu0
      %v725 = vadd.f32 %v652, %v724
      %v726 = vpop.f32.mrf.mxu0
      %727 = vdwg.mxu0
      %728 = vrot.lane.b32.xlu0 %v572, 96
      %v729 = vpop.permute.xlu0 %728
      %v732 = vsel %vm581, %v575, 0
      %734 = vmatprep.subr.mxu0 0.0
      %735 = vmatpush1.msra.mxu0 0.0
      %736 = vmatprep.subr.mxu0 0.0
      %737 = vmatpush1.msra.mxu0 0.0
      %738 = vmatprep.subr.mxu0 0.0
      %739 = vmatpush1.msra.mxu0 0.0
      %740 = vmatprep.subr.mxu0 0.0
      %741 = vmatpush1.msra.mxu0 0.0
      %742 = vmatprep.subr.mxu0 0.0
      %743 = vmatpush1.msra.mxu0 0.0
      %744 = vmatprep.subr.mxu0 0.0
      %745 = vmatpush1.msra.mxu0 0.0
      %746 = vmatprep.subr.mxu0 0.0
      %747 = vmatpush1.msra.mxu0 0.0
      %748 = vmatprep.subr.mxu0 0.0
      %749 = vmatpush1.msra.mxu0 0.0
      %750 = vmatprep.subr.mxu0 0.0
      %751 = vmatpush1.msra.mxu0 0.0
      %752 = vmatprep.subr.mxu0 0.0
      %753 = vmatpush1.msra.mxu0 0.0
      %754 = vmatprep.subr.mxu0 0.0
      %755 = vmatpush1.msra.mxu0 0.0
      %756 = vmatprep.subr.mxu0 0.0
      %757 = vmatpush1.msra.mxu0 0.0
      %758 = vmatprep.subr.mxu0 0.0
      %759 = vmatpush1.msra.mxu0 0.0
      %760 = vmatprep.subr.mxu0 0.0
      %761 = vmatpush1.msra.mxu0 0.0
      %762 = vmatprep.subr.mxu0 0.0
      %763 = vmatpush1.msra.mxu0 0.0
      %764 = vmatprep.subr.mxu0 0.0
      %765 = vmatpush1.msra.mxu0 %v729
      %766 = vmatprep.subr.mxu0 0.0
      %767 = vmatpush2.msra.mxu0 0.0
      %768 = vmatprep.subr.mxu0 0.0
      %769 = vmatpush2.msra.mxu0 0.0
      %770 = vmatprep.subr.mxu0 0.0
      %771 = vmatpush2.msra.mxu0 0.0
      %772 = vmatprep.subr.mxu0 0.0
      %773 = vmatpush2.msra.mxu0 0.0
      %774 = vmatprep.subr.mxu0 0.0
      %775 = vmatpush2.msra.mxu0 0.0
      %776 = vmatprep.subr.mxu0 0.0
      %777 = vmatpush2.msra.mxu0 0.0
      %778 = vmatprep.subr.mxu0 0.0
      %779 = vmatpush2.msra.mxu0 0.0
      %780 = vmatprep.subr.mxu0 0.0
      %781 = vmatpush2.msra.mxu0 0.0
      %782 = vmatprep.subr.mxu0 0.0
      %783 = vmatpush2.msra.mxu0 0.0
      %784 = vmatprep.subr.mxu0 0.0
      %785 = vmatpush2.msra.mxu0 0.0
      %786 = vmatprep.subr.mxu0 0.0
      %787 = vmatpush2.msra.mxu0 0.0
      %788 = vmatprep.subr.mxu0 0.0
      %789 = vmatpush2.msra.mxu0 0.0
      %790 = vmatprep.subr.mxu0 0.0
      %791 = vmatpush2.msra.mxu0 0.0
      %792 = vmatprep.subr.mxu0 0.0
      %793 = vmatpush2.msra.mxu0 0.0
      %794 = vmatprep.subr.mxu0 0.0
      %795 = vmatpush2.msra.mxu0 0.0
      %796 = vmatprep.subr.mxu0 0.0
      %797 = vmatpush2.msra.mxu0 0.0
      %798 = vmatprep.mubr.f32.mxu0 0.0
      %799 = vmatmul.mubr.f32.gmra.mxu0 %v732
      %v800 = vpop.f32.mrf.mxu0
      %v801 = vadd.f32 0.0, %v800
      %v802 = vpop.f32.mrf.mxu0
      %803 = vdwg.mxu0
      %v804 = vadd.f32 %v725, %v801
      %805 = vrot.lane.b32.xlu0 %v572, 80
      %v806 = vpop.permute.xlu0 %805
      %v809 = vsel %vm581, %v576, 0
      %811 = vmatprep.subr.mxu0 0.0
      %812 = vmatpush1.msra.mxu0 0.0
      %813 = vmatprep.subr.mxu0 0.0
      %814 = vmatpush1.msra.mxu0 0.0
      %815 = vmatprep.subr.mxu0 0.0
      %816 = vmatpush1.msra.mxu0 0.0
      %817 = vmatprep.subr.mxu0 0.0
      %818 = vmatpush1.msra.mxu0 0.0
      %819 = vmatprep.subr.mxu0 0.0
      %820 = vmatpush1.msra.mxu0 0.0
      %821 = vmatprep.subr.mxu0 0.0
      %822 = vmatpush1.msra.mxu0 0.0
      %823 = vmatprep.subr.mxu0 0.0
      %824 = vmatpush1.msra.mxu0 0.0
      %825 = vmatprep.subr.mxu0 0.0
      %826 = vmatpush1.msra.mxu0 0.0
      %827 = vmatprep.subr.mxu0 0.0
      %828 = vmatpush1.msra.mxu0 0.0
      %829 = vmatprep.subr.mxu0 0.0
      %830 = vmatpush1.msra.mxu0 0.0
      %831 = vmatprep.subr.mxu0 0.0
      %832 = vmatpush1.msra.mxu0 0.0
      %833 = vmatprep.subr.mxu0 0.0
      %834 = vmatpush1.msra.mxu0 0.0
      %835 = vmatprep.subr.mxu0 0.0
      %836 = vmatpush1.msra.mxu0 0.0
      %837 = vmatprep.subr.mxu0 0.0
      %838 = vmatpush1.msra.mxu0 0.0
      %839 = vmatprep.subr.mxu0 0.0
      %840 = vmatpush1.msra.mxu0 0.0
      %841 = vmatprep.subr.mxu0 0.0
      %842 = vmatpush1.msra.mxu0 %v806
      %843 = vmatprep.subr.mxu0 0.0
      %844 = vmatpush2.msra.mxu0 0.0
      %845 = vmatprep.subr.mxu0 0.0
      %846 = vmatpush2.msra.mxu0 0.0
      %847 = vmatprep.subr.mxu0 0.0
      %848 = vmatpush2.msra.mxu0 0.0
      %849 = vmatprep.subr.mxu0 0.0
      %850 = vmatpush2.msra.mxu0 0.0
      %851 = vmatprep.subr.mxu0 0.0
      %852 = vmatpush2.msra.mxu0 0.0
      %853 = vmatprep.subr.mxu0 0.0
      %854 = vmatpush2.msra.mxu0 0.0
      %855 = vmatprep.subr.mxu0 0.0
      %856 = vmatpush2.msra.mxu0 0.0
      %857 = vmatprep.subr.mxu0 0.0
      %858 = vmatpush2.msra.mxu0 0.0
      %859 = vmatprep.subr.mxu0 0.0
      %860 = vmatpush2.msra.mxu0 0.0
      %861 = vmatprep.subr.mxu0 0.0
      %862 = vmatpush2.msra.mxu0 0.0
      %863 = vmatprep.subr.mxu0 0.0
      %864 = vmatpush2.msra.mxu0 0.0
      %865 = vmatprep.subr.mxu0 0.0
      %866 = vmatpush2.msra.mxu0 0.0
      %867 = vmatprep.subr.mxu0 0.0
      %868 = vmatpush2.msra.mxu0 0.0
      %869 = vmatprep.subr.mxu0 0.0
      %870 = vmatpush2.msra.mxu0 0.0
      %871 = vmatprep.subr.mxu0 0.0
      %872 = vmatpush2.msra.mxu0 0.0
      %873 = vmatprep.subr.mxu0 0.0
      %874 = vmatpush2.msra.mxu0 0.0
      %875 = vmatprep.mubr.f32.mxu0 0.0
      %876 = vmatmul.mubr.f32.gmra.mxu0 %v809
      %v877 = vpop.f32.mrf.mxu0
      %v878 = vadd.f32 0.0, %v877
      %v879 = vpop.f32.mrf.mxu0
      %880 = vdwg.mxu0
      %v881 = vadd.f32 %v804, %v878
      %s882 = scalar_lea.vmem %s5, 8
      %v883 = vld [vmem:[%s882] sm:$0xff]
      %885 = vset.pattern.permute.xlu0 0
      %886 = vperm.xlu0 %885, %v883
      %v887 = vpop.permute.xlu0 %886
      %v889 = vadd.f32 %v881, %v887
      %v890 = vmax.f32 %v889, 0.0
      %v891 = vld [vmem:[%s3] sm:$0xff]
      %v892 = vld [vmem:[%s3 + $0x8] sm:$0xff]
      %v893 = vld [vmem:[%s3 + $0x10] sm:$0xff]
      %v894 = vld [vmem:[%s3 + $0x18] sm:$0xff]
      %896 = vrot.lane.b32.xlu0 %v890, 124
      %v897 = vpop.permute.xlu0 %896
      %v900 = vsel %vm581, %v892, 0
      %902 = vmatprep.subr.mxu0 0.0
      %903 = vmatpush1.msra.mxu0 0.0
      %904 = vmatprep.subr.mxu0 0.0
      %905 = vmatpush1.msra.mxu0 0.0
      %906 = vmatprep.subr.mxu0 0.0
      %907 = vmatpush1.msra.mxu0 0.0
      %908 = vmatprep.subr.mxu0 0.0
      %909 = vmatpush1.msra.mxu0 0.0
      %910 = vmatprep.subr.mxu0 0.0
      %911 = vmatpush1.msra.mxu0 0.0
      %912 = vmatprep.subr.mxu0 0.0
      %913 = vmatpush1.msra.mxu0 0.0
      %914 = vmatprep.subr.mxu0 0.0
      %915 = vmatpush1.msra.mxu0 0.0
      %916 = vmatprep.subr.mxu0 0.0
      %917 = vmatpush1.msra.mxu0 0.0
      %918 = vmatprep.subr.mxu0 0.0
      %919 = vmatpush1.msra.mxu0 0.0
      %920 = vmatprep.subr.mxu0 0.0
      %921 = vmatpush1.msra.mxu0 0.0
      %922 = vmatprep.subr.mxu0 0.0
      %923 = vmatpush1.msra.mxu0 0.0
      %924 = vmatprep.subr.mxu0 0.0
      %925 = vmatpush1.msra.mxu0 0.0
      %926 = vmatprep.subr.mxu0 0.0
      %927 = vmatpush1.msra.mxu0 0.0
      %928 = vmatprep.subr.mxu0 0.0
      %929 = vmatpush1.msra.mxu0 0.0
      %930 = vmatprep.subr.mxu0 0.0
      %931 = vmatpush1.msra.mxu0 0.0
      %932 = vmatprep.subr.mxu0 0.0
      %933 = vmatpush1.msra.mxu0 %v897
      %934 = vmatprep.subr.mxu0 0.0
      %935 = vmatpush2.msra.mxu0 0.0
      %936 = vmatprep.subr.mxu0 0.0
      %937 = vmatpush2.msra.mxu0 0.0
      %938 = vmatprep.subr.mxu0 0.0
      %939 = vmatpush2.msra.mxu0 0.0
      %940 = vmatprep.subr.mxu0 0.0
      %941 = vmatpush2.msra.mxu0 0.0
      %942 = vmatprep.subr.mxu0 0.0
      %943 = vmatpush2.msra.mxu0 0.0
      %944 = vmatprep.subr.mxu0 0.0
      %945 = vmatpush2.msra.mxu0 0.0
      %946 = vmatprep.subr.mxu0 0.0
      %947 = vmatpush2.msra.mxu0 0.0
      %948 = vmatprep.subr.mxu0 0.0
      %949 = vmatpush2.msra.mxu0 0.0
      %950 = vmatprep.subr.mxu0 0.0
      %951 = vmatpush2.msra.mxu0 0.0
      %952 = vmatprep.subr.mxu0 0.0
      %953 = vmatpush2.msra.mxu0 0.0
      %954 = vmatprep.subr.mxu0 0.0
      %955 = vmatpush2.msra.mxu0 0.0
      %956 = vmatprep.subr.mxu0 0.0
      %957 = vmatpush2.msra.mxu0 0.0
      %958 = vmatprep.subr.mxu0 0.0
      %959 = vmatpush2.msra.mxu0 0.0
      %960 = vmatprep.subr.mxu0 0.0
      %961 = vmatpush2.msra.mxu0 0.0
      %962 = vmatprep.subr.mxu0 0.0
      %963 = vmatpush2.msra.mxu0 0.0
      %964 = vmatprep.subr.mxu0 0.0
      %965 = vmatpush2.msra.mxu0 0.0
      %966 = vmatprep.mubr.f32.mxu0 0.0
      %967 = vmatmul.mubr.f32.gmra.mxu0 %v900
      %v968 = vpop.f32.mrf.mxu0
      %v969 = vadd.f32 0.0, %v968
      %v970 = vpop.f32.mrf.mxu0
      %971 = vdwg.mxu0
      %v973 = vsel %vm581, %v891, 0
      %975 = vmatprep.subr.mxu0 0.0
      %976 = vmatpush1.msra.mxu0 0.0
      %977 = vmatprep.subr.mxu0 0.0
      %978 = vmatpush1.msra.mxu0 0.0
      %979 = vmatprep.subr.mxu0 0.0
      %980 = vmatpush1.msra.mxu0 0.0
      %981 = vmatprep.subr.mxu0 0.0
      %982 = vmatpush1.msra.mxu0 0.0
      %983 = vmatprep.subr.mxu0 0.0
      %984 = vmatpush1.msra.mxu0 0.0
      %985 = vmatprep.subr.mxu0 0.0
      %986 = vmatpush1.msra.mxu0 0.0
      %987 = vmatprep.subr.mxu0 0.0
      %988 = vmatpush1.msra.mxu0 0.0
      %989 = vmatprep.subr.mxu0 0.0
      %990 = vmatpush1.msra.mxu0 0.0
      %991 = vmatprep.subr.mxu0 0.0
      %992 = vmatpush1.msra.mxu0 0.0
      %993 = vmatprep.subr.mxu0 0.0
      %994 = vmatpush1.msra.mxu0 0.0
      %995 = vmatprep.subr.mxu0 0.0
      %996 = vmatpush1.msra.mxu0 0.0
      %997 = vmatprep.subr.mxu0 0.0
      %998 = vmatpush1.msra.mxu0 0.0
      %999 = vmatprep.subr.mxu0 0.0
      %1000 = vmatpush1.msra.mxu0 0.0
      %1001 = vmatprep.subr.mxu0 0.0
      %1002 = vmatpush1.msra.mxu0 0.0
      %1003 = vmatprep.subr.mxu0 0.0
      %1004 = vmatpush1.msra.mxu0 0.0
      %1005 = vmatprep.subr.mxu0 0.0
      %1006 = vmatpush1.msra.mxu0 %v890
      %1007 = vmatprep.subr.mxu0 0.0
      %1008 = vmatpush2.msra.mxu0 0.0
      %1009 = vmatprep.subr.mxu0 0.0
      %1010 = vmatpush2.msra.mxu0 0.0
      %1011 = vmatprep.subr.mxu0 0.0
      %1012 = vmatpush2.msra.mxu0 0.0
      %1013 = vmatprep.subr.mxu0 0.0
      %1014 = vmatpush2.msra.mxu0 0.0
      %1015 = vmatprep.subr.mxu0 0.0
      %1016 = vmatpush2.msra.mxu0 0.0
      %1017 = vmatprep.subr.mxu0 0.0
      %1018 = vmatpush2.msra.mxu0 0.0
      %1019 = vmatprep.subr.mxu0 0.0
      %1020 = vmatpush2.msra.mxu0 0.0
      %1021 = vmatprep.subr.mxu0 0.0
      %1022 = vmatpush2.msra.mxu0 0.0
      %1023 = vmatprep.subr.mxu0 0.0
      %1024 = vmatpush2.msra.mxu0 0.0
      %1025 = vmatprep.subr.mxu0 0.0
      %1026 = vmatpush2.msra.mxu0 0.0
      %1027 = vmatprep.subr.mxu0 0.0
      %1028 = vmatpush2.msra.mxu0 0.0
      %1029 = vmatprep.subr.mxu0 0.0
      %1030 = vmatpush2.msra.mxu0 0.0
      %1031 = vmatprep.subr.mxu0 0.0
      %1032 = vmatpush2.msra.mxu0 0.0
      %1033 = vmatprep.subr.mxu0 0.0
      %1034 = vmatpush2.msra.mxu0 0.0
      %1035 = vmatprep.subr.mxu0 0.0
      %1036 = vmatpush2.msra.mxu0 0.0
      %1037 = vmatprep.subr.mxu0 0.0
      %1038 = vmatpush2.msra.mxu0 0.0
      %1039 = vmatprep.mubr.f32.mxu0 0.0
      %1040 = vmatmul.mubr.f32.gmra.mxu0 %v973
      %v1041 = vpop.f32.mrf.mxu0
      %v1042 = vadd.f32 %v969, %v1041
      %v1043 = vpop.f32.mrf.mxu0
      %1044 = vdwg.mxu0
      %1045 = vrot.lane.b32.xlu0 %v890, 120
      %v1046 = vpop.permute.xlu0 %1045
      %v1049 = vsel %vm581, %v893, 0
      %1051 = vmatprep.subr.mxu0 0.0
      %1052 = vmatpush1.msra.mxu0 0.0
      %1053 = vmatprep.subr.mxu0 0.0
      %1054 = vmatpush1.msra.mxu0 0.0
      %1055 = vmatprep.subr.mxu0 0.0
      %1056 = vmatpush1.msra.mxu0 0.0
      %1057 = vmatprep.subr.mxu0 0.0
      %1058 = vmatpush1.msra.mxu0 0.0
      %1059 = vmatprep.subr.mxu0 0.0
      %1060 = vmatpush1.msra.mxu0 0.0
      %1061 = vmatprep.subr.mxu0 0.0
      %1062 = vmatpush1.msra.mxu0 0.0
      %1063 = vmatprep.subr.mxu0 0.0
      %1064 = vmatpush1.msra.mxu0 0.0
      %1065 = vmatprep.subr.mxu0 0.0
      %1066 = vmatpush1.msra.mxu0 0.0
      %1067 = vmatprep.subr.mxu0 0.0
      %1068 = vmatpush1.msra.mxu0 0.0
      %1069 = vmatprep.subr.mxu0 0.0
      %1070 = vmatpush1.msra.mxu0 0.0
      %1071 = vmatprep.subr.mxu0 0.0
      %1072 = vmatpush1.msra.mxu0 0.0
      %1073 = vmatprep.subr.mxu0 0.0
      %1074 = vmatpush1.msra.mxu0 0.0
      %1075 = vmatprep.subr.mxu0 0.0
      %1076 = vmatpush1.msra.mxu0 0.0
      %1077 = vmatprep.subr.mxu0 0.0
      %1078 = vmatpush1.msra.mxu0 0.0
      %1079 = vmatprep.subr.mxu0 0.0
      %1080 = vmatpush1.msra.mxu0 0.0
      %1081 = vmatprep.subr.mxu0 0.0
      %1082 = vmatpush1.msra.mxu0 %v1046
      %1083 = vmatprep.subr.mxu0 0.0
      %1084 = vmatpush2.msra.mxu0 0.0
      %1085 = vmatprep.subr.mxu0 0.0
      %1086 = vmatpush2.msra.mxu0 0.0
      %1087 = vmatprep.subr.mxu0 0.0
      %1088 = vmatpush2.msra.mxu0 0.0
      %1089 = vmatprep.subr.mxu0 0.0
      %1090 = vmatpush2.msra.mxu0 0.0
      %1091 = vmatprep.subr.mxu0 0.0
      %1092 = vmatpush2.msra.mxu0 0.0
      %1093 = vmatprep.subr.mxu0 0.0
      %1094 = vmatpush2.msra.mxu0 0.0
      %1095 = vmatprep.subr.mxu0 0.0
      %1096 = vmatpush2.msra.mxu0 0.0
      %1097 = vmatprep.subr.mxu0 0.0
      %1098 = vmatpush2.msra.mxu0 0.0
      %1099 = vmatprep.subr.mxu0 0.0
      %1100 = vmatpush2.msra.mxu0 0.0
      %1101 = vmatprep.subr.mxu0 0.0
      %1102 = vmatpush2.msra.mxu0 0.0
      %1103 = vmatprep.subr.mxu0 0.0
      %1104 = vmatpush2.msra.mxu0 0.0
      %1105 = vmatprep.subr.mxu0 0.0
      %1106 = vmatpush2.msra.mxu0 0.0
      %1107 = vmatprep.subr.mxu0 0.0
      %1108 = vmatpush2.msra.mxu0 0.0
      %1109 = vmatprep.subr.mxu0 0.0
      %1110 = vmatpush2.msra.mxu0 0.0
      %1111 = vmatprep.subr.mxu0 0.0
      %1112 = vmatpush2.msra.mxu0 0.0
      %1113 = vmatprep.subr.mxu0 0.0
      %1114 = vmatpush2.msra.mxu0 0.0
      %1115 = vmatprep.mubr.f32.mxu0 0.0
      %1116 = vmatmul.mubr.f32.gmra.mxu0 %v1049
      %v1117 = vpop.f32.mrf.mxu0
      %v1118 = vadd.f32 0.0, %v1117
      %v1119 = vpop.f32.mrf.mxu0
      %1120 = vdwg.mxu0
      %v1121 = vadd.f32 %v1042, %v1118
      %1122 = vrot.lane.b32.xlu0 %v890, 116
      %v1123 = vpop.permute.xlu0 %1122
      %v1126 = vsel %vm581, %v894, 0
      %1128 = vmatprep.subr.mxu0 0.0
      %1129 = vmatpush1.msra.mxu0 0.0
      %1130 = vmatprep.subr.mxu0 0.0
      %1131 = vmatpush1.msra.mxu0 0.0
      %1132 = vmatprep.subr.mxu0 0.0
      %1133 = vmatpush1.msra.mxu0 0.0
      %1134 = vmatprep.subr.mxu0 0.0
      %1135 = vmatpush1.msra.mxu0 0.0
      %1136 = vmatprep.subr.mxu0 0.0
      %1137 = vmatpush1.msra.mxu0 0.0
      %1138 = vmatprep.subr.mxu0 0.0
      %1139 = vmatpush1.msra.mxu0 0.0
      %1140 = vmatprep.subr.mxu0 0.0
      %1141 = vmatpush1.msra.mxu0 0.0
      %1142 = vmatprep.subr.mxu0 0.0
      %1143 = vmatpush1.msra.mxu0 0.0
      %1144 = vmatprep.subr.mxu0 0.0
      %1145 = vmatpush1.msra.mxu0 0.0
      %1146 = vmatprep.subr.mxu0 0.0
      %1147 = vmatpush1.msra.mxu0 0.0
      %1148 = vmatprep.subr.mxu0 0.0
      %1149 = vmatpush1.msra.mxu0 0.0
      %1150 = vmatprep.subr.mxu0 0.0
      %1151 = vmatpush1.msra.mxu0 0.0
      %1152 = vmatprep.subr.mxu0 0.0
      %1153 = vmatpush1.msra.mxu0 0.0
      %1154 = vmatprep.subr.mxu0 0.0
      %1155 = vmatpush1.msra.mxu0 0.0
      %1156 = vmatprep.subr.mxu0 0.0
      %1157 = vmatpush1.msra.mxu0 0.0
      %1158 = vmatprep.subr.mxu0 0.0
      %1159 = vmatpush1.msra.mxu0 %v1123
      %1160 = vmatprep.subr.mxu0 0.0
      %1161 = vmatpush2.msra.mxu0 0.0
      %1162 = vmatprep.subr.mxu0 0.0
      %1163 = vmatpush2.msra.mxu0 0.0
      %1164 = vmatprep.subr.mxu0 0.0
      %1165 = vmatpush2.msra.mxu0 0.0
      %1166 = vmatprep.subr.mxu0 0.0
      %1167 = vmatpush2.msra.mxu0 0.0
      %1168 = vmatprep.subr.mxu0 0.0
      %1169 = vmatpush2.msra.mxu0 0.0
      %1170 = vmatprep.subr.mxu0 0.0
      %1171 = vmatpush2.msra.mxu0 0.0
      %1172 = vmatprep.subr.mxu0 0.0
      %1173 = vmatpush2.msra.mxu0 0.0
      %1174 = vmatprep.subr.mxu0 0.0
      %1175 = vmatpush2.msra.mxu0 0.0
      %1176 = vmatprep.subr.mxu0 0.0
      %1177 = vmatpush2.msra.mxu0 0.0
      %1178 = vmatprep.subr.mxu0 0.0
      %1179 = vmatpush2.msra.mxu0 0.0
      %1180 = vmatprep.subr.mxu0 0.0
      %1181 = vmatpush2.msra.mxu0 0.0
      %1182 = vmatprep.subr.mxu0 0.0
      %1183 = vmatpush2.msra.mxu0 0.0
      %1184 = vmatprep.subr.mxu0 0.0
      %1185 = vmatpush2.msra.mxu0 0.0
      %1186 = vmatprep.subr.mxu0 0.0
      %1187 = vmatpush2.msra.mxu0 0.0
      %1188 = vmatprep.subr.mxu0 0.0
      %1189 = vmatpush2.msra.mxu0 0.0
      %1190 = vmatprep.subr.mxu0 0.0
      %1191 = vmatpush2.msra.mxu0 0.0
      %1192 = vmatprep.mubr.f32.mxu0 0.0
      %1193 = vmatmul.mubr.f32.gmra.mxu0 %v1126
      %v1194 = vpop.f32.mrf.mxu0
      %v1195 = vadd.f32 0.0, %v1194
      %v1196 = vpop.f32.mrf.mxu0
      %1197 = vdwg.mxu0
      %v1198 = vadd.f32 %v1121, %v1195
      %s1199 = scalar_lea.vmem %s5, 16
      %v1200 = vld [vmem:[%s1199] sm:$0xff]
      %1202 = vset.pattern.permute.xlu0 0
      %1203 = vperm.xlu0 %1202, %v1200
      %v1204 = vpop.permute.xlu0 %1203
      %v1206 = vadd.f32 %v1198, %v1204
      %v1207 = vmax.f32 %v1206, 0.0
      %v1208 = vld [vmem:[%s4] sm:$0xff]
      %v1209 = vld [vmem:[%s4 + $0x8] sm:$0xff]
      %v1210 = vld [vmem:[%s4 + $0x10] sm:$0xff]
      %v1211 = vld [vmem:[%s4 + $0x18] sm:$0xff]
      %1213 = vrot.lane.b32.xlu0 %v1207, 127
      %v1214 = vpop.permute.xlu0 %1213
      %v1217 = vsel %vm581, %v1209, 0
      %1219 = vmatprep.subr.mxu0 0.0
      %1220 = vmatpush1.msra.mxu0 0.0
      %1221 = vmatprep.subr.mxu0 0.0
      %1222 = vmatpush1.msra.mxu0 0.0
      %1223 = vmatprep.subr.mxu0 0.0
      %1224 = vmatpush1.msra.mxu0 0.0
      %1225 = vmatprep.subr.mxu0 0.0
      %1226 = vmatpush1.msra.mxu0 0.0
      %1227 = vmatprep.subr.mxu0 0.0
      %1228 = vmatpush1.msra.mxu0 0.0
      %1229 = vmatprep.subr.mxu0 0.0
      %1230 = vmatpush1.msra.mxu0 0.0
      %1231 = vmatprep.subr.mxu0 0.0
      %1232 = vmatpush1.msra.mxu0 0.0
      %1233 = vmatprep.subr.mxu0 0.0
      %1234 = vmatpush1.msra.mxu0 0.0
      %1235 = vmatprep.subr.mxu0 0.0
      %1236 = vmatpush1.msra.mxu0 0.0
      %1237 = vmatprep.subr.mxu0 0.0
      %1238 = vmatpush1.msra.mxu0 0.0
      %1239 = vmatprep.subr.mxu0 0.0
      %1240 = vmatpush1.msra.mxu0 0.0
      %1241 = vmatprep.subr.mxu0 0.0
      %1242 = vmatpush1.msra.mxu0 0.0
      %1243 = vmatprep.subr.mxu0 0.0
      %1244 = vmatpush1.msra.mxu0 0.0
      %1245 = vmatprep.subr.mxu0 0.0
      %1246 = vmatpush1.msra.mxu0 0.0
      %1247 = vmatprep.subr.mxu0 0.0
      %1248 = vmatpush1.msra.mxu0 0.0
      %1249 = vmatprep.subr.mxu0 0.0
      %1250 = vmatpush1.msra.mxu0 %v1214
      %1251 = vmatprep.subr.mxu0 0.0
      %1252 = vmatpush2.msra.mxu0 0.0
      %1253 = vmatprep.subr.mxu0 0.0
      %1254 = vmatpush2.msra.mxu0 0.0
      %1255 = vmatprep.subr.mxu0 0.0
      %1256 = vmatpush2.msra.mxu0 0.0
      %1257 = vmatprep.subr.mxu0 0.0
      %1258 = vmatpush2.msra.mxu0 0.0
      %1259 = vmatprep.subr.mxu0 0.0
      %1260 = vmatpush2.msra.mxu0 0.0
      %1261 = vmatprep.subr.mxu0 0.0
      %1262 = vmatpush2.msra.mxu0 0.0
      %1263 = vmatprep.subr.mxu0 0.0
      %1264 = vmatpush2.msra.mxu0 0.0
      %1265 = vmatprep.subr.mxu0 0.0
      %1266 = vmatpush2.msra.mxu0 0.0
      %1267 = vmatprep.subr.mxu0 0.0
      %1268 = vmatpush2.msra.mxu0 0.0
      %1269 = vmatprep.subr.mxu0 0.0
      %1270 = vmatpush2.msra.mxu0 0.0
      %1271 = vmatprep.subr.mxu0 0.0
      %1272 = vmatpush2.msra.mxu0 0.0
      %1273 = vmatprep.subr.mxu0 0.0
      %1274 = vmatpush2.msra.mxu0 0.0
      %1275 = vmatprep.subr.mxu0 0.0
      %1276 = vmatpush2.msra.mxu0 0.0
      %1277 = vmatprep.subr.mxu0 0.0
      %1278 = vmatpush2.msra.mxu0 0.0
      %1279 = vmatprep.subr.mxu0 0.0
      %1280 = vmatpush2.msra.mxu0 0.0
      %1281 = vmatprep.subr.mxu0 0.0
      %1282 = vmatpush2.msra.mxu0 0.0
      %1283 = vmatprep.mubr.f32.mxu0 0.0
      %1284 = vmatmul.mubr.f32.gmra.mxu0 %v1217
      %v1285 = vpop.f32.mrf.mxu0
      %v1286 = vadd.f32 0.0, %v1285
      %v1287 = vpop.f32.mrf.mxu0
      %1288 = vdwg.mxu0
      %v1290 = vsel %vm581, %v1208, 0
      %1292 = vmatprep.subr.mxu0 0.0
      %1293 = vmatpush1.msra.mxu0 0.0
      %1294 = vmatprep.subr.mxu0 0.0
      %1295 = vmatpush1.msra.mxu0 0.0
      %1296 = vmatprep.subr.mxu0 0.0
      %1297 = vmatpush1.msra.mxu0 0.0
      %1298 = vmatprep.subr.mxu0 0.0
      %1299 = vmatpush1.msra.mxu0 0.0
      %1300 = vmatprep.subr.mxu0 0.0
      %1301 = vmatpush1.msra.mxu0 0.0
      %1302 = vmatprep.subr.mxu0 0.0
      %1303 = vmatpush1.msra.mxu0 0.0
      %1304 = vmatprep.subr.mxu0 0.0
      %1305 = vmatpush1.msra.mxu0 0.0
      %1306 = vmatprep.subr.mxu0 0.0
      %1307 = vmatpush1.msra.mxu0 0.0
      %1308 = vmatprep.subr.mxu0 0.0
      %1309 = vmatpush1.msra.mxu0 0.0
      %1310 = vmatprep.subr.mxu0 0.0
      %1311 = vmatpush1.msra.mxu0 0.0
      %1312 = vmatprep.subr.mxu0 0.0
      %1313 = vmatpush1.msra.mxu0 0.0
      %1314 = vmatprep.subr.mxu0 0.0
      %1315 = vmatpush1.msra.mxu0 0.0
      %1316 = vmatprep.subr.mxu0 0.0
      %1317 = vmatpush1.msra.mxu0 0.0
      %1318 = vmatprep.subr.mxu0 0.0
      %1319 = vmatpush1.msra.mxu0 0.0
      %1320 = vmatprep.subr.mxu0 0.0
      %1321 = vmatpush1.msra.mxu0 0.0
      %1322 = vmatprep.subr.mxu0 0.0
      %1323 = vmatpush1.msra.mxu0 %v1207
      %1324 = vmatprep.subr.mxu0 0.0
      %1325 = vmatpush2.msra.mxu0 0.0
      %1326 = vmatprep.subr.mxu0 0.0
      %1327 = vmatpush2.msra.mxu0 0.0
      %1328 = vmatprep.subr.mxu0 0.0
      %1329 = vmatpush2.msra.mxu0 0.0
      %1330 = vmatprep.subr.mxu0 0.0
      %1331 = vmatpush2.msra.mxu0 0.0
      %1332 = vmatprep.subr.mxu0 0.0
      %1333 = vmatpush2.msra.mxu0 0.0
      %1334 = vmatprep.subr.mxu0 0.0
      %1335 = vmatpush2.msra.mxu0 0.0
      %1336 = vmatprep.subr.mxu0 0.0
      %1337 = vmatpush2.msra.mxu0 0.0
      %1338 = vmatprep.subr.mxu0 0.0
      %1339 = vmatpush2.msra.mxu0 0.0
      %1340 = vmatprep.subr.mxu0 0.0
      %1341 = vmatpush2.msra.mxu0 0.0
      %1342 = vmatprep.subr.mxu0 0.0
      %1343 = vmatpush2.msra.mxu0 0.0
      %1344 = vmatprep.subr.mxu0 0.0
      %1345 = vmatpush2.msra.mxu0 0.0
      %1346 = vmatprep.subr.mxu0 0.0
      %1347 = vmatpush2.msra.mxu0 0.0
      %1348 = vmatprep.subr.mxu0 0.0
      %1349 = vmatpush2.msra.mxu0 0.0
      %1350 = vmatprep.subr.mxu0 0.0
      %1351 = vmatpush2.msra.mxu0 0.0
      %1352 = vmatprep.subr.mxu0 0.0
      %1353 = vmatpush2.msra.mxu0 0.0
      %1354 = vmatprep.subr.mxu0 0.0
      %1355 = vmatpush2.msra.mxu0 0.0
      %1356 = vmatprep.mubr.f32.mxu0 0.0
      %1357 = vmatmul.mubr.f32.gmra.mxu0 %v1290
      %v1358 = vpop.f32.mrf.mxu0
      %v1359 = vadd.f32 %v1286, %v1358
      %v1360 = vpop.f32.mrf.mxu0
      %1361 = vdwg.mxu0
      %1362 = vrot.lane.b32.xlu0 %v1207, 126
      %v1363 = vpop.permute.xlu0 %1362
      %v1366 = vsel %vm581, %v1210, 0
      %1368 = vmatprep.subr.mxu0 0.0
      %1369 = vmatpush1.msra.mxu0 0.0
      %1370 = vmatprep.subr.mxu0 0.0
      %1371 = vmatpush1.msra.mxu0 0.0
      %1372 = vmatprep.subr.mxu0 0.0
      %1373 = vmatpush1.msra.mxu0 0.0
      %1374 = vmatprep.subr.mxu0 0.0
      %1375 = vmatpush1.msra.mxu0 0.0
      %1376 = vmatprep.subr.mxu0 0.0
      %1377 = vmatpush1.msra.mxu0 0.0
      %1378 = vmatprep.subr.mxu0 0.0
      %1379 = vmatpush1.msra.mxu0 0.0
      %1380 = vmatprep.subr.mxu0 0.0
      %1381 = vmatpush1.msra.mxu0 0.0
      %1382 = vmatprep.subr.mxu0 0.0
      %1383 = vmatpush1.msra.mxu0 0.0
      %1384 = vmatprep.subr.mxu0 0.0
      %1385 = vmatpush1.msra.mxu0 0.0
      %1386 = vmatprep.subr.mxu0 0.0
      %1387 = vmatpush1.msra.mxu0 0.0
      %1388 = vmatprep.subr.mxu0 0.0
      %1389 = vmatpush1.msra.mxu0 0.0
      %1390 = vmatprep.subr.mxu0 0.0
      %1391 = vmatpush1.msra.mxu0 0.0
      %1392 = vmatprep.subr.mxu0 0.0
      %1393 = vmatpush1.msra.mxu0 0.0
      %1394 = vmatprep.subr.mxu0 0.0
      %1395 = vmatpush1.msra.mxu0 0.0
      %1396 = vmatprep.subr.mxu0 0.0
      %1397 = vmatpush1.msra.mxu0 0.0
      %1398 = vmatprep.subr.mxu0 0.0
      %1399 = vmatpush1.msra.mxu0 %v1363
      %1400 = vmatprep.subr.mxu0 0.0
      %1401 = vmatpush2.msra.mxu0 0.0
      %1402 = vmatprep.subr.mxu0 0.0
      %1403 = vmatpush2.msra.mxu0 0.0
      %1404 = vmatprep.subr.mxu0 0.0
      %1405 = vmatpush2.msra.mxu0 0.0
      %1406 = vmatprep.subr.mxu0 0.0
      %1407 = vmatpush2.msra.mxu0 0.0
      %1408 = vmatprep.subr.mxu0 0.0
      %1409 = vmatpush2.msra.mxu0 0.0
      %1410 = vmatprep.subr.mxu0 0.0
      %1411 = vmatpush2.msra.mxu0 0.0
      %1412 = vmatprep.subr.mxu0 0.0
      %1413 = vmatpush2.msra.mxu0 0.0
      %1414 = vmatprep.subr.mxu0 0.0
      %1415 = vmatpush2.msra.mxu0 0.0
      %1416 = vmatprep.subr.mxu0 0.0
      %1417 = vmatpush2.msra.mxu0 0.0
      %1418 = vmatprep.subr.mxu0 0.0
      %1419 = vmatpush2.msra.mxu0 0.0
      %1420 = vmatprep.subr.mxu0 0.0
      %1421 = vmatpush2.msra.mxu0 0.0
      %1422 = vmatprep.subr.mxu0 0.0
      %1423 = vmatpush2.msra.mxu0 0.0
      %1424 = vmatprep.subr.mxu0 0.0
      %1425 = vmatpush2.msra.mxu0 0.0
      %1426 = vmatprep.subr.mxu0 0.0
      %1427 = vmatpush2.msra.mxu0 0.0
      %1428 = vmatprep.subr.mxu0 0.0
      %1429 = vmatpush2.msra.mxu0 0.0
      %1430 = vmatprep.subr.mxu0 0.0
      %1431 = vmatpush2.msra.mxu0 0.0
      %1432 = vmatprep.mubr.f32.mxu0 0.0
      %1433 = vmatmul.mubr.f32.gmra.mxu0 %v1366
      %v1434 = vpop.f32.mrf.mxu0
      %v1435 = vadd.f32 0.0, %v1434
      %v1436 = vpop.f32.mrf.mxu0
      %1437 = vdwg.mxu0
      %v1438 = vadd.f32 %v1359, %v1435
      %1439 = vrot.lane.b32.xlu0 %v1207, 125
      %v1440 = vpop.permute.xlu0 %1439
      %v1443 = vsel %vm581, %v1211, 0
      %1445 = vmatprep.subr.mxu0 0.0
      %1446 = vmatpush1.msra.mxu0 0.0
      %1447 = vmatprep.subr.mxu0 0.0
      %1448 = vmatpush1.msra.mxu0 0.0
      %1449 = vmatprep.subr.mxu0 0.0
      %1450 = vmatpush1.msra.mxu0 0.0
      %1451 = vmatprep.subr.mxu0 0.0
      %1452 = vmatpush1.msra.mxu0 0.0
      %1453 = vmatprep.subr.mxu0 0.0
      %1454 = vmatpush1.msra.mxu0 0.0
      %1455 = vmatprep.subr.mxu0 0.0
      %1456 = vmatpush1.msra.mxu0 0.0
      %1457 = vmatprep.subr.mxu0 0.0
      %1458 = vmatpush1.msra.mxu0 0.0
      %1459 = vmatprep.subr.mxu0 0.0
      %1460 = vmatpush1.msra.mxu0 0.0
      %1461 = vmatprep.subr.mxu0 0.0
      %1462 = vmatpush1.msra.mxu0 0.0
      %1463 = vmatprep.subr.mxu0 0.0
      %1464 = vmatpush1.msra.mxu0 0.0
      %1465 = vmatprep.subr.mxu0 0.0
      %1466 = vmatpush1.msra.mxu0 0.0
      %1467 = vmatprep.subr.mxu0 0.0
      %1468 = vmatpush1.msra.mxu0 0.0
      %1469 = vmatprep.subr.mxu0 0.0
      %1470 = vmatpush1.msra.mxu0 0.0
      %1471 = vmatprep.subr.mxu0 0.0
      %1472 = vmatpush1.msra.mxu0 0.0
      %1473 = vmatprep.subr.mxu0 0.0
      %1474 = vmatpush1.msra.mxu0 0.0
      %1475 = vmatprep.subr.mxu0 0.0
      %1476 = vmatpush1.msra.mxu0 %v1440
      %1477 = vmatprep.subr.mxu0 0.0
      %1478 = vmatpush2.msra.mxu0 0.0
      %1479 = vmatprep.subr.mxu0 0.0
      %1480 = vmatpush2.msra.mxu0 0.0
      %1481 = vmatprep.subr.mxu0 0.0
      %1482 = vmatpush2.msra.mxu0 0.0
      %1483 = vmatprep.subr.mxu0 0.0
      %1484 = vmatpush2.msra.mxu0 0.0
      %1485 = vmatprep.subr.mxu0 0.0
      %1486 = vmatpush2.msra.mxu0 0.0
      %1487 = vmatprep.subr.mxu0 0.0
      %1488 = vmatpush2.msra.mxu0 0.0
      %1489 = vmatprep.subr.mxu0 0.0
      %1490 = vmatpush2.msra.mxu0 0.0
      %1491 = vmatprep.subr.mxu0 0.0
      %1492 = vmatpush2.msra.mxu0 0.0
      %1493 = vmatprep.subr.mxu0 0.0
      %1494 = vmatpush2.msra.mxu0 0.0
      %1495 = vmatprep.subr.mxu0 0.0
      %1496 = vmatpush2.msra.mxu0 0.0
      %1497 = vmatprep.subr.mxu0 0.0
      %1498 = vmatpush2.msra.mxu0 0.0
      %1499 = vmatprep.subr.mxu0 0.0
      %1500 = vmatpush2.msra.mxu0 0.0
      %1501 = vmatprep.subr.mxu0 0.0
      %1502 = vmatpush2.msra.mxu0 0.0
      %1503 = vmatprep.subr.mxu0 0.0
      %1504 = vmatpush2.msra.mxu0 0.0
      %1505 = vmatprep.subr.mxu0 0.0
      %1506 = vmatpush2.msra.mxu0 0.0
      %1507 = vmatprep.subr.mxu0 0.0
      %1508 = vmatpush2.msra.mxu0 0.0
      %1509 = vmatprep.mubr.f32.mxu0 0.0
      %1510 = vmatmul.mubr.f32.gmra.mxu0 %v1443
      %v1511 = vpop.f32.mrf.mxu0
      %v1512 = vadd.f32 0.0, %v1511
      %v1513 = vpop.f32.mrf.mxu0
      %1514 = vdwg.mxu0
      %v1515 = vadd.f32 %v1438, %v1512
      %s1516 = scalar_lea.vmem %s5, 24
      %v1517 = vld [vmem:[%s1516] sm:$0xff]
      %v1518 = vadd.f32 %v1515, %v1517
      %v1519 = vmax.f32 %v1518, 0.0
      %vm1520 = vcmask 7168
      %1521 = vst.msk [vmem:[%s249] sm:$0xff] %vm1520, %v1519
      %p1522 = scmp.lt.s32.totalorder %s17, 1
      %s1523 = scalar_select %p1522, %s17, 1
      %s1524 = smul.addr %s1523, 8
      %s1525 = scalar_lea.vmem %s6, %s1524
      // Predicated region
      $region45: #{_lambda_.1} parent=43 // pred_check
        %p1526 = pneg %p166
      $region46: #{_lambda_.1} parent=43 // pred_check_branch
        %1528 = sbr.rel (%p1526) target = $region48
      $region47: #{_lambda_.1} parent=43 // pred_region
        _
      $region48: #{_lambda_.1} parent=43 // pred_fallthru
        _
    $region44: #{_lambda_.1} parent=5 // pred_fallthru
      _
    %p1529 = scmp.le.s32.totalorder 2, %s12
    // Predicated region
    $region49: #{_lambda_.1} parent=5 // pred_check
      %p1530 = pneg %p1529
    $region50: #{_lambda_.1} parent=5 // pred_check_branch
      %1532 = sbr.rel (%p1530) target = $region52
    $region51: #{_lambda_.1} parent=5 // pred_region
      %s1533 = ssub.s32 %s12, 2
      // Predicated region
      $region53: #{_lambda_.1} parent=51 // pred_check
        %p1534 = pneg %p172
      $region54: #{_lambda_.1} parent=51 // pred_check_branch
        %1536 = sbr.rel (%p1534) target = $region56
      $region55: #{_lambda_.1} parent=51 // pred_region
        %p1537 = scmp.lt.s32.totalorder %s18, 1
        %s1538 = scalar_select %p1537, %s18, 1
        %s1539 = smul.addr %s1538, 8
        %s1540 = scalar_lea.vmem %s6, %s1539
      $region56: #{_lambda_.1} parent=51 // pred_fallthru
        _
    $region52: #{_lambda_.1} parent=5 // pred_fallthru
      _
  $region6: #{_lambda_.1} parent=0 // loop_footer
    %s16 = sadd.s32 1, %s12
  $region7: #{_lambda_.1} parent=0 // loop_footer_branch
    %11 = sbr.rel target = $region3
  $region8: #{_lambda_.1} parent=0 // loop_exit
    _

</llo_original>
